<compile_context>
chip_gen: v7x
topology: tpu7x:2x2x1
jax: 0.10.0
libtpu: 0.0.40
codegen_flags: <defaults>
</compile_context>

<pallas_src>
import math
import numpy as np
import jax
import jax.numpy as jnp
from jax import lax
from jax.experimental import pallas as pl
from jax.experimental.pallas import tpu as pltpu


# ----------------------------- Pallas kernel -------------------------------- #

def _make_mha_kernel(num_heads, head_dim, batch_block, need_weights):
    embed_dim = num_heads * head_dim

    def body(x_ref, wqkv_ref, bqkv_ref, wo_ref, bo_ref, out_ref, w_ref,
             cat_sc, w_sc):
        # x_ref:    (Bb, T, E) batch block        out_ref: (Bb, T, E)
        # wqkv_ref: (E, 3E) bf16   bqkv_ref: (1, 3E) f32 (Q cols pre-scaled)
        # wo_ref:   (E, E)  bf16   bo_ref:   (1, E)  f32
        # w_ref:    (Bb, T, S) f32 head-averaged weights (only if need_weights)
        # cat_sc:   (T, E) f32 VMEM scratch (per-head outputs concatenated)
        # w_sc:     (T, S) f32 VMEM scratch (head-summed probabilities)
        E = embed_dim

        # Resident weights; loaded once per grid step from VMEM.
        wqkv = wqkv_ref[...]
        wo = wo_ref[...]
        bqkv = bqkv_ref[...]
        bo = bo_ref[...]

        for bi in range(batch_block):
            x = x_ref[bi].astype(jnp.bfloat16)                          # (T, E)
            # Fused QKV projection (bf16 MXU, f32 accumulate); never hits HBM.
            qkv = jnp.dot(x, wqkv, preferred_element_type=jnp.float32) + bqkv

            if need_weights:
                w_sc[...] = jnp.zeros_like(w_sc)

            for h in range(num_heads):
                lo = h * head_dim
                hi = lo + head_dim
                # 1/sqrt(head_dim) is already folded into the Q columns of wqkv/bqkv.
                q = qkv[:, lo:hi].astype(jnp.bfloat16)                  # (T, Dh)
                k = qkv[:, E + lo:E + hi].astype(jnp.bfloat16)          # (S, Dh)
                v = qkv[:, 2 * E + lo:2 * E + hi].astype(jnp.bfloat16)  # (S, Dh)

                # Contract the head dim of q and k directly -- no k.T / XLU transpose.
                s = lax.dot_general(q, k, (((1,), (1,)), ((), ())),
                                    preferred_element_type=jnp.float32)  # (T, S)

                # Softmax in f32; EUP approximate reciprocal for the denominator.
                m = jnp.max(s, axis=-1, keepdims=True)
                p = jnp.exp(s - m)
                denom = jnp.sum(p, axis=-1, keepdims=True)
                p = p * pl.reciprocal(denom, approx=True)               # (T, S)

                if need_weights:
                    w_sc[...] += p

                # Per-head attention output into its column slice of the concat
                # scratch; the output projection is done ONCE (K = E) afterwards.
                o_h = jnp.dot(p.astype(jnp.bfloat16), v,
                              preferred_element_type=jnp.float32)       # (T, Dh)
                cat_sc[:, lo:hi] = o_h

            out = jnp.dot(cat_sc[...].astype(jnp.bfloat16), wo,
                          preferred_element_type=jnp.float32) + bo      # (T, E)
            out_ref[bi] = out.astype(out_ref.dtype)
            if need_weights:
                w_ref[bi] = (w_sc[...] * (1.0 / num_heads)).astype(w_ref.dtype)

    if need_weights:
        def kernel(x_ref, wqkv_ref, bqkv_ref, wo_ref, bo_ref,
                   out_ref, w_ref, cat_sc, w_sc):
            body(x_ref, wqkv_ref, bqkv_ref, wo_ref, bo_ref,
                 out_ref, w_ref, cat_sc, w_sc)
    else:
        def kernel(x_ref, wqkv_ref, bqkv_ref, wo_ref, bo_ref,
                   out_ref, cat_sc):
            body(x_ref, wqkv_ref, bqkv_ref, wo_ref, bo_ref,
                 out_ref, None, cat_sc, None)
    return kernel


# ----------------------------- Pallas wrapper -------------------------------- #

def _pick_batch_block(B, max_block=8):
    """Largest batch block <= max_block that still leaves >=2 grid steps
    (so both v7x TensorCores get 'parallel' work); falls back to B if B == 1."""
    candidates = [bb for bb in range(1, min(B, max_block) + 1)
                  if B % bb == 0 and B // bb >= 2]
    return max(candidates) if candidates else B


def _vmem_limit_bytes(Bb, T, E, need_weights):
    f32, bf16 = 4, 2
    weights = (E * 3 * E + E * E) * bf16 + (4 * E) * f32          # single-buffered
    io = 2 * 2 * (Bb * T * E) * f32                               # x + out, double buf
    if need_weights:
        io += 2 * (Bb * T * T) * f32
    scratch = (T * E + (T * T if need_weights else 0)) * f32
    interm = (T * 3 * E + 3 * T * T + 2 * T * E) * f32            # qkv slab, scores, temps
    est = int((weights + io + scratch + interm) * 2) + (4 << 20)  # 2x headroom + margin
    try:
        phys = pltpu.get_tpu_info().vmem_capacity_bytes
    except Exception:
        phys = 64 << 20                                           # v7x worst case
    return max(32 << 20, min(est, int(phys * 0.9)))


def _build_mha_call(B, T, E, batch_block, num_heads, need_weights,
                    single_buffer_weights):
    head_dim = E // num_heads
    kernel = _make_mha_kernel(num_heads, head_dim, batch_block, need_weights)

    # Weight/bias blocks never change across the grid -> one resident copy.
    const_kw = ({"pipeline_mode": pl.Buffered(1)} if single_buffer_weights else {})

    out_shape = jax.ShapeDtypeStruct((B, T, E), jnp.float32)
    out_specs = pl.BlockSpec((batch_block, T, E), lambda b: (b, 0, 0))
    scratch_shapes = [pltpu.VMEM((T, E), jnp.float32)]
    if need_weights:
        out_shape = (out_shape, jax.ShapeDtypeStruct((B, T, T), jnp.float32))
        out_specs = (out_specs,
                     pl.BlockSpec((batch_block, T, T), lambda b: (b, 0, 0)))
        scratch_shapes.append(pltpu.VMEM((T, T), jnp.float32))

    return pl.pallas_call(
        kernel,
        out_shape=out_shape,
        grid_spec=pltpu.PrefetchScalarGridSpec(
            num_scalar_prefetch=0,
            grid=(B // batch_block,),
            in_specs=[
                pl.BlockSpec((batch_block, T, E), lambda b: (b, 0, 0)),   # tokens
                pl.BlockSpec((E, 3 * E), lambda b: (0, 0), **const_kw),   # qkv w (bf16)
                pl.BlockSpec((1, 3 * E), lambda b: (0, 0), **const_kw),   # qkv b (f32)
                pl.BlockSpec((E, E), lambda b: (0, 0), **const_kw),       # o w (bf16)
                pl.BlockSpec((1, E), lambda b: (0, 0), **const_kw),       # o b (f32)
            ],
            out_specs=out_specs,
            scratch_shapes=scratch_shapes,
        ),
        compiler_params=pltpu.CompilerParams(
            dimension_semantics=("parallel",),
            vmem_limit_bytes=_vmem_limit_bytes(batch_block, T, E, need_weights),
        ),
    )


def _mha_pallas(x, qkv_w, qkv_b, o_w, o_b, num_heads, need_weights):
    """x: (B, T, E) f32. Weights already prepared by prepare_params (bf16, scaled)."""
    B, T, E = x.shape
    batch_block = _pick_batch_block(B)
    last_err = None
    # Try single-buffered resident weights first (halves their VMEM footprint);
    # fall back to default buffering if this JAX build rejects Buffered(1).
    for single_buf in (True, False):
        try:
            call = _build_mha_call(B, T, E, batch_block, num_heads,
                                   need_weights, single_buf)
            res = call(x, qkv_w, qkv_b, o_w, o_b)
            return jax.block_until_ready(res)
        except Exception as e:  # pragma: no cover - fallback path
            last_err = e
    raise last_err


# ----------------------------- Parameter prep -------------------------------- #

def prepare_params(params, num_heads):
    """One-time kernel-side parameter prep (NOT per forward pass):
      * fold 1/sqrt(head_dim) into the Q columns of qkv_w and qkv_b,
      * cast matmul weights to bf16 for the MXU, keep biases in f32,
      * reshape biases to (1, N) rows for in-kernel broadcast."""
    E = params["o_w"].shape[0]
    head_dim = E // num_heads
    scaling = float(head_dim) ** (-0.5)
    scale_cols = jnp.concatenate(
        [jnp.full((E,), scaling, jnp.float32), jnp.ones((2 * E,), jnp.float32)])
    qkv_w = (params["qkv_w"] * scale_cols[None, :]).astype(jnp.bfloat16)
    qkv_b = (params["qkv_b"] * scale_cols).astype(jnp.float32).reshape(1, 3 * E)
    o_w = params["o_w"].astype(jnp.bfloat16)
    o_b = params["o_b"].astype(jnp.float32).reshape(1, E)
    return {"qkv_w": qkv_w, "qkv_b": qkv_b, "o_w": o_w, "o_b": o_b}


# ----------------------------- Module forward -------------------------------- #

def multihead_attention_forward(prepped, query, key, value, num_heads,
                                need_weights=True):
    """Reproduces MultiheadAttention.forward (dropout=0, no masks).

    query/key/value: (tgt_len, bsz, embed_dim). As in the reference module, the QKV
    projection is applied to `query` only (self-attention; key/value args unused).
    `prepped` must come from prepare_params."""
    tgt_len, bsz, embed_dim = query.shape

    # Single input transpose to (B, T, E); all head splitting / attention / output
    # projection happens inside one fused Pallas kernel.
    x = jnp.transpose(query, (1, 0, 2))

    res = _mha_pallas(x, prepped["qkv_w"], prepped["qkv_b"],
                      prepped["o_w"], prepped["o_b"], num_heads, need_weights)
    if need_weights:
        out_bte, attn_w = res
    else:
        out_bte, attn_w = res, None

    out = jnp.transpose(out_bte, (1, 0, 2))            # back to (T, B, E)
    return out, attn_w                                  # attn_w: (B, T, S) or None


# ----------------------------- Parameter init --------------------------------- #

def init_params(key, embed_dim):
    k1, k2 = jax.random.split(key)
    # qkv_net: xavier_uniform weight, zero bias. Stored as (in, out) for x @ W.
    fan_in, fan_out = embed_dim, 3 * embed_dim
    bound = math.sqrt(6.0 / (fan_in + fan_out))
    qkv_w = jax.random.uniform(k1, (embed_dim, 3 * embed_dim),
                               minval=-bound, maxval=bound, dtype=jnp.float32)
    qkv_b = jnp.zeros((3 * embed_dim,), jnp.float32)
    # o_net: default Linear-ish weight init, zero bias.
    bound_o = 1.0 / math.sqrt(embed_dim)
    o_w = jax.random.uniform(k2, (embed_dim, embed_dim),
                             minval=-bound_o, maxval=bound_o, dtype=jnp.float32)
    o_b = jnp.zeros((embed_dim,), jnp.float32)
    return {"qkv_w": qkv_w, "qkv_b": qkv_b, "o_w": o_w, "o_b": o_b}


# --------------------------- Pure-JAX reference -------------------------------- #

def reference_forward(params, query, num_heads):
    tgt_len, bsz, embed_dim = query.shape
    head_dim = embed_dim // num_heads
    scaling = float(head_dim) ** (-0.5)
    qkv = query.reshape(-1, embed_dim) @ params["qkv_w"] + params["qkv_b"]
    qkv = qkv.reshape(tgt_len, bsz, 3 * embed_dim)
    q, k, v = jnp.split(qkv, 3, axis=-1)
    q = q * scaling

    def to_bh(t):
        return jnp.transpose(t.reshape(tgt_len, bsz * num_heads, head_dim), (1, 0, 2))

    q, k, v = to_bh(q), to_bh(k), to_bh(v)
    s = jnp.einsum("btd,bsd->bts", q, k)
    p = jax.nn.softmax(s, axis=-1)
    o = jnp.einsum("bts,bsd->btd", p, v)
    o = jnp.transpose(o, (1, 0, 2)).reshape(tgt_len, bsz, embed_dim)
    o = o.reshape(-1, embed_dim) @ params["o_w"] + params["o_b"]
    o = o.reshape(tgt_len, bsz, embed_dim)
    w = p.reshape(bsz, num_heads, tgt_len, tgt_len).sum(1) / num_heads
    return o, w


# ----------------------------------- Main --------------------------------------- #

if __name__ == "__main__":
    embed_dim = 32
    num_heads = 4
    tgt_len = 8
    bsz = 2

    key = jax.random.PRNGKey(0)
    kp, kq = jax.random.split(key)
    params = init_params(kp, embed_dim)
    prepped = prepare_params(params, num_heads)        # one-time prep (fold + bf16)
    query = jax.random.normal(kq, (tgt_len, bsz, embed_dim), dtype=jnp.float32)

    # Self-attention usage (key/value args are unused by the module's QKV path).
    out, attn_w = multihead_attention_forward(prepped, query, query, query,
                                              num_heads, need_weights=True)
    out = jax.block_until_ready(out)
    attn_w = jax.block_until_ready(attn_w)

    # need_weights=False variant (no weights tensor is written at all).
    out_nw, none_w = multihead_attention_forward(prepped, query, query, query,
                                                 num_heads, need_weights=False)
    out_nw = jax.block_until_ready(out_nw)
    assert none_w is None

    ref_out, ref_w = reference_forward(params, query, num_heads)
    assert out.shape == (tgt_len, bsz, embed_dim)
    assert attn_w.shape == (bsz, tgt_len, tgt_len)
    assert out_nw.shape == (tgt_len, bsz, embed_dim)

    # Tolerances account for bf16 MXU operands (softmax itself stays in f32) and the
    # EUP approximate reciprocal used for the softmax denominator.
    np.testing.assert_allclose(np.asarray(out), np.asarray(ref_out),
                               rtol=5e-2, atol=1e-2)
    np.testing.assert_allclose(np.asarray(out_nw), np.asarray(ref_out),
                               rtol=5e-2, atol=1e-2)
    np.testing.assert_allclose(np.asarray(attn_w), np.asarray(ref_w),
                               rtol=5e-2, atol=5e-3)
    print("KERNEL_OK")
</pallas_src>

<mosaic_0001>
module attributes {stable_mosaic.version = 11 : i64} {
  func.func @kernel(%arg0: i32, %arg1: memref<1x8x32xf32, #tpu.memory_space<vmem>>, %arg2: memref<32x96xbf16, #tpu.memory_space<vmem>>, %arg3: memref<1x96xf32, #tpu.memory_space<vmem>>, %arg4: memref<32x32xbf16, #tpu.memory_space<vmem>>, %arg5: memref<1x32xf32, #tpu.memory_space<vmem>>, %arg6: memref<1x8x32xf32, #tpu.memory_space<vmem>>, %arg7: memref<1x8x8xf32, #tpu.memory_space<vmem>>, %arg8: memref<8x32xf32, #tpu.memory_space<vmem>>, %arg9: memref<8x8xf32, #tpu.memory_space<vmem>>) attributes {dimension_semantics = [#tpu.dimension_semantics<parallel>], iteration_bounds = array<i64: 2>, scalar_prefetch = 0 : i64, scratch_operands = 2 : i64, tpu.core_type = #tpu.core_type<tc>, window_params = [{transform_indices = @transform_0, window_bounds = array<i64: 1, 8, 32>}, {pipeline_mode = #tpu.pipeline_mode<synchronous>, transform_indices = @transform_1, window_bounds = array<i64: 32, 96>}, {pipeline_mode = #tpu.pipeline_mode<synchronous>, transform_indices = @transform_2, window_bounds = array<i64: 1, 96>}, {pipeline_mode = #tpu.pipeline_mode<synchronous>, transform_indices = @transform_3, window_bounds = array<i64: 32, 32>}, {pipeline_mode = #tpu.pipeline_mode<synchronous>, transform_indices = @transform_4, window_bounds = array<i64: 1, 32>}, {transform_indices = @transform_5, window_bounds = array<i64: 1, 8, 32>}, {transform_indices = @transform_6, window_bounds = array<i64: 1, 8, 8>}]} {
    %c0 = arith.constant 0 : index
    %c0_0 = arith.constant 0 : index
    %0 = vector.load %arg2[%c0, %c0_0] : memref<32x96xbf16, #tpu.memory_space<vmem>>, vector<32x96xbf16>
    %c0_1 = arith.constant 0 : index
    %c0_2 = arith.constant 0 : index
    %1 = vector.load %arg4[%c0_1, %c0_2] : memref<32x32xbf16, #tpu.memory_space<vmem>>, vector<32x32xbf16>
    %c0_3 = arith.constant 0 : index
    %c0_4 = arith.constant 0 : index
    %2 = vector.load %arg3[%c0_3, %c0_4] : memref<1x96xf32, #tpu.memory_space<vmem>>, vector<1x96xf32>
    %c0_5 = arith.constant 0 : index
    %c0_6 = arith.constant 0 : index
    %3 = vector.load %arg5[%c0_5, %c0_6] : memref<1x32xf32, #tpu.memory_space<vmem>>, vector<1x32xf32>
    %c0_7 = arith.constant 0 : index
    %c0_8 = arith.constant 0 : index
    %c0_9 = arith.constant 0 : index
    %4 = vector.load %arg1[%c0_7, %c0_8, %c0_9] : memref<1x8x32xf32, #tpu.memory_space<vmem>>, vector<1x8x32xf32>
    %5 = vector.shape_cast %4 : vector<1x8x32xf32> to vector<8x32xf32>
    %6 = arith.truncf %5 : vector<8x32xf32> to vector<8x32xbf16>
    %cst = arith.constant dense<0.000000e+00> : vector<8x96xf32>
    %7 = tpu.matmul %6, %0, %cst {dimension_numbers = #tpu.dot_dimension_numbers<[1], [0], [0], [1], [0, 0, 1, 1], [], []>} : vector<8x32xbf16>, vector<32x96xbf16>, vector<8x96xf32> -> vector<8x96xf32>
    %8 = vector.broadcast %2 : vector<1x96xf32> to vector<8x96xf32>
    %9 = arith.addf %7, %8 : vector<8x96xf32>
    %cst_10 = arith.constant 0.000000e+00 : f32
    %10 = vector.broadcast %cst_10 : f32 to vector<8x8xf32>
    %c0_11 = arith.constant 0 : index
    %c0_12 = arith.constant 0 : index
    %11 = vector.load %arg9[%c0_11, %c0_12] : memref<8x8xf32, #tpu.memory_space<vmem>>, vector<8x8xf32>
    tpu.vector_store %arg9[%c0_11, %c0_12], %10 {strides = array<i32>} : memref<8x8xf32, #tpu.memory_space<vmem>>, vector<8x8xf32>,
    %12 = vector.extract_strided_slice %9 {offsets = [0, 0], sizes = [8, 8], strides = [1, 1]} : vector<8x96xf32> to vector<8x8xf32>
    %13 = arith.truncf %12 : vector<8x8xf32> to vector<8x8xbf16>
    %14 = vector.extract_strided_slice %9 {offsets = [0, 32], sizes = [8, 8], strides = [1, 1]} : vector<8x96xf32> to vector<8x8xf32>
    %15 = arith.truncf %14 : vector<8x8xf32> to vector<8x8xbf16>
    %16 = vector.extract_strided_slice %9 {offsets = [0, 64], sizes = [8, 8], strides = [1, 1]} : vector<8x96xf32> to vector<8x8xf32>
    %17 = arith.truncf %16 : vector<8x8xf32> to vector<8x8xbf16>
    %cst_13 = arith.constant dense<0.000000e+00> : vector<8x8xf32>
    %18 = tpu.matmul %13, %15, %cst_13 {dimension_numbers = #tpu.dot_dimension_numbers<[1], [1], [0], [0], [0, 0, 1, 0], [], []>} : vector<8x8xbf16>, vector<8x8xbf16>, vector<8x8xf32> -> vector<8x8xf32>
    %cst_14 = arith.constant dense<0xFF800000> : vector<8xf32>
    %19 = vector.multi_reduction <maximumf>, %18, %cst_14 [1] : vector<8x8xf32> to vector<8xf32>
    %20 = vector.shape_cast %19 : vector<8xf32> to vector<8x1xf32>
    %21 = vector.broadcast %20 : vector<8x1xf32> to vector<8x8xf32>
    %22 = arith.subf %18, %21 : vector<8x8xf32>
    %23 = math.exp %22 : vector<8x8xf32>
    %cst_15 = arith.constant dense<0.000000e+00> : vector<8xf32>
    %24 = vector.multi_reduction <add>, %23, %cst_15 [1] : vector<8x8xf32> to vector<8xf32>
    %25 = vector.shape_cast %24 : vector<8xf32> to vector<8x1xf32>
    %26 = tpu.reciprocal %25 {approx = true} : vector<8x1xf32> -> vector<8x1xf32>
    %27 = vector.broadcast %26 : vector<8x1xf32> to vector<8x8xf32>
    %28 = arith.mulf %23, %27 : vector<8x8xf32>
    %c0_16 = arith.constant 0 : index
    %c0_17 = arith.constant 0 : index
    %29 = vector.load %arg9[%c0_16, %c0_17] : memref<8x8xf32, #tpu.memory_space<vmem>>, vector<8x8xf32>
    %30 = arith.addf %29, %28 : vector<8x8xf32>
    %c0_18 = arith.constant 0 : index
    %c0_19 = arith.constant 0 : index
    %31 = vector.load %arg9[%c0_18, %c0_19] : memref<8x8xf32, #tpu.memory_space<vmem>>, vector<8x8xf32>
    tpu.vector_store %arg9[%c0_18, %c0_19], %30 {strides = array<i32>} : memref<8x8xf32, #tpu.memory_space<vmem>>, vector<8x8xf32>,
    %32 = arith.truncf %28 : vector<8x8xf32> to vector<8x8xbf16>
    %cst_20 = arith.constant dense<0.000000e+00> : vector<8x8xf32>
    %33 = tpu.matmul %32, %17, %cst_20 {dimension_numbers = #tpu.dot_dimension_numbers<[1], [0], [0], [1], [0, 0, 1, 1], [], []>} : vector<8x8xbf16>, vector<8x8xbf16>, vector<8x8xf32> -> vector<8x8xf32>
    %c0_21 = arith.constant 0 : index
    %c0_22 = arith.constant 0 : index
    %34 = vector.load %arg8[%c0_21, %c0_22] : memref<8x32xf32, #tpu.memory_space<vmem>>, vector<8x8xf32>
    tpu.vector_store %arg8[%c0_21, %c0_22], %33 {strides = array<i32>} : memref<8x32xf32, #tpu.memory_space<vmem>>, vector<8x8xf32>,
    %35 = vector.extract_strided_slice %9 {offsets = [0, 8], sizes = [8, 8], strides = [1, 1]} : vector<8x96xf32> to vector<8x8xf32>
    %36 = arith.truncf %35 : vector<8x8xf32> to vector<8x8xbf16>
    %37 = vector.extract_strided_slice %9 {offsets = [0, 40], sizes = [8, 8], strides = [1, 1]} : vector<8x96xf32> to vector<8x8xf32>
    %38 = arith.truncf %37 : vector<8x8xf32> to vector<8x8xbf16>
    %39 = vector.extract_strided_slice %9 {offsets = [0, 72], sizes = [8, 8], strides = [1, 1]} : vector<8x96xf32> to vector<8x8xf32>
    %40 = arith.truncf %39 : vector<8x8xf32> to vector<8x8xbf16>
    %cst_23 = arith.constant dense<0.000000e+00> : vector<8x8xf32>
    %41 = tpu.matmul %36, %38, %cst_23 {dimension_numbers = #tpu.dot_dimension_numbers<[1], [1], [0], [0], [0, 0, 1, 0], [], []>} : vector<8x8xbf16>, vector<8x8xbf16>, vector<8x8xf32> -> vector<8x8xf32>
    %cst_24 = arith.constant dense<0xFF800000> : vector<8xf32>
    %42 = vector.multi_reduction <maximumf>, %41, %cst_24 [1] : vector<8x8xf32> to vector<8xf32>
    %43 = vector.shape_cast %42 : vector<8xf32> to vector<8x1xf32>
    %44 = vector.broadcast %43 : vector<8x1xf32> to vector<8x8xf32>
    %45 = arith.subf %41, %44 : vector<8x8xf32>
    %46 = math.exp %45 : vector<8x8xf32>
    %cst_25 = arith.constant dense<0.000000e+00> : vector<8xf32>
    %47 = vector.multi_reduction <add>, %46, %cst_25 [1] : vector<8x8xf32> to vector<8xf32>
    %48 = vector.shape_cast %47 : vector<8xf32> to vector<8x1xf32>
    %49 = tpu.reciprocal %48 {approx = true} : vector<8x1xf32> -> vector<8x1xf32>
    %50 = vector.broadcast %49 : vector<8x1xf32> to vector<8x8xf32>
    %51 = arith.mulf %46, %50 : vector<8x8xf32>
    %c0_26 = arith.constant 0 : index
    %c0_27 = arith.constant 0 : index
    %52 = vector.load %arg9[%c0_26, %c0_27] : memref<8x8xf32, #tpu.memory_space<vmem>>, vector<8x8xf32>
    %53 = arith.addf %52, %51 : vector<8x8xf32>
    %c0_28 = arith.constant 0 : index
    %c0_29 = arith.constant 0 : index
    %54 = vector.load %arg9[%c0_28, %c0_29] : memref<8x8xf32, #tpu.memory_space<vmem>>, vector<8x8xf32>
    tpu.vector_store %arg9[%c0_28, %c0_29], %53 {strides = array<i32>} : memref<8x8xf32, #tpu.memory_space<vmem>>, vector<8x8xf32>,
    %55 = arith.truncf %51 : vector<8x8xf32> to vector<8x8xbf16>
    %cst_30 = arith.constant dense<0.000000e+00> : vector<8x8xf32>
    %56 = tpu.matmul %55, %40, %cst_30 {dimension_numbers = #tpu.dot_dimension_numbers<[1], [0], [0], [1], [0, 0, 1, 1], [], []>} : vector<8x8xbf16>, vector<8x8xbf16>, vector<8x8xf32> -> vector<8x8xf32>
    %c0_31 = arith.constant 0 : index
    %c8 = arith.constant 8 : index
    %57 = vector.load %arg8[%c0_31, %c8] : memref<8x32xf32, #tpu.memory_space<vmem>>, vector<8x8xf32>
    tpu.vector_store %arg8[%c0_31, %c8], %56 {strides = array<i32>} : memref<8x32xf32, #tpu.memory_space<vmem>>, vector<8x8xf32>,
    %58 = vector.extract_strided_slice %9 {offsets = [0, 16], sizes = [8, 8], strides = [1, 1]} : vector<8x96xf32> to vector<8x8xf32>
    %59 = arith.truncf %58 : vector<8x8xf32> to vector<8x8xbf16>
    %60 = vector.extract_strided_slice %9 {offsets = [0, 48], sizes = [8, 8], strides = [1, 1]} : vector<8x96xf32> to vector<8x8xf32>
    %61 = arith.truncf %60 : vector<8x8xf32> to vector<8x8xbf16>
    %62 = vector.extract_strided_slice %9 {offsets = [0, 80], sizes = [8, 8], strides = [1, 1]} : vector<8x96xf32> to vector<8x8xf32>
    %63 = arith.truncf %62 : vector<8x8xf32> to vector<8x8xbf16>
    %cst_32 = arith.constant dense<0.000000e+00> : vector<8x8xf32>
    %64 = tpu.matmul %59, %61, %cst_32 {dimension_numbers = #tpu.dot_dimension_numbers<[1], [1], [0], [0], [0, 0, 1, 0], [], []>} : vector<8x8xbf16>, vector<8x8xbf16>, vector<8x8xf32> -> vector<8x8xf32>
    %cst_33 = arith.constant dense<0xFF800000> : vector<8xf32>
    %65 = vector.multi_reduction <maximumf>, %64, %cst_33 [1] : vector<8x8xf32> to vector<8xf32>
    %66 = vector.shape_cast %65 : vector<8xf32> to vector<8x1xf32>
    %67 = vector.broadcast %66 : vector<8x1xf32> to vector<8x8xf32>
    %68 = arith.subf %64, %67 : vector<8x8xf32>
    %69 = math.exp %68 : vector<8x8xf32>
    %cst_34 = arith.constant dense<0.000000e+00> : vector<8xf32>
    %70 = vector.multi_reduction <add>, %69, %cst_34 [1] : vector<8x8xf32> to vector<8xf32>
    %71 = vector.shape_cast %70 : vector<8xf32> to vector<8x1xf32>
    %72 = tpu.reciprocal %71 {approx = true} : vector<8x1xf32> -> vector<8x1xf32>
    %73 = vector.broadcast %72 : vector<8x1xf32> to vector<8x8xf32>
    %74 = arith.mulf %69, %73 : vector<8x8xf32>
    %c0_35 = arith.constant 0 : index
    %c0_36 = arith.constant 0 : index
    %75 = vector.load %arg9[%c0_35, %c0_36] : memref<8x8xf32, #tpu.memory_space<vmem>>, vector<8x8xf32>
    %76 = arith.addf %75, %74 : vector<8x8xf32>
    %c0_37 = arith.constant 0 : index
    %c0_38 = arith.constant 0 : index
    %77 = vector.load %arg9[%c0_37, %c0_38] : memref<8x8xf32, #tpu.memory_space<vmem>>, vector<8x8xf32>
    tpu.vector_store %arg9[%c0_37, %c0_38], %76 {strides = array<i32>} : memref<8x8xf32, #tpu.memory_space<vmem>>, vector<8x8xf32>,
    %78 = arith.truncf %74 : vector<8x8xf32> to vector<8x8xbf16>
    %cst_39 = arith.constant dense<0.000000e+00> : vector<8x8xf32>
    %79 = tpu.matmul %78, %63, %cst_39 {dimension_numbers = #tpu.dot_dimension_numbers<[1], [0], [0], [1], [0, 0, 1, 1], [], []>} : vector<8x8xbf16>, vector<8x8xbf16>, vector<8x8xf32> -> vector<8x8xf32>
    %c0_40 = arith.constant 0 : index
    %c16 = arith.constant 16 : index
    %80 = vector.load %arg8[%c0_40, %c16] : memref<8x32xf32, #tpu.memory_space<vmem>>, vector<8x8xf32>
    tpu.vector_store %arg8[%c0_40, %c16], %79 {strides = array<i32>} : memref<8x32xf32, #tpu.memory_space<vmem>>, vector<8x8xf32>,
    %81 = vector.extract_strided_slice %9 {offsets = [0, 24], sizes = [8, 8], strides = [1, 1]} : vector<8x96xf32> to vector<8x8xf32>
    %82 = arith.truncf %81 : vector<8x8xf32> to vector<8x8xbf16>
    %83 = vector.extract_strided_slice %9 {offsets = [0, 56], sizes = [8, 8], strides = [1, 1]} : vector<8x96xf32> to vector<8x8xf32>
    %84 = arith.truncf %83 : vector<8x8xf32> to vector<8x8xbf16>
    %85 = vector.extract_strided_slice %9 {offsets = [0, 88], sizes = [8, 8], strides = [1, 1]} : vector<8x96xf32> to vector<8x8xf32>
    %86 = arith.truncf %85 : vector<8x8xf32> to vector<8x8xbf16>
    %cst_41 = arith.constant dense<0.000000e+00> : vector<8x8xf32>
    %87 = tpu.matmul %82, %84, %cst_41 {dimension_numbers = #tpu.dot_dimension_numbers<[1], [1], [0], [0], [0, 0, 1, 0], [], []>} : vector<8x8xbf16>, vector<8x8xbf16>, vector<8x8xf32> -> vector<8x8xf32>
    %cst_42 = arith.constant dense<0xFF800000> : vector<8xf32>
    %88 = vector.multi_reduction <maximumf>, %87, %cst_42 [1] : vector<8x8xf32> to vector<8xf32>
    %89 = vector.shape_cast %88 : vector<8xf32> to vector<8x1xf32>
    %90 = vector.broadcast %89 : vector<8x1xf32> to vector<8x8xf32>
    %91 = arith.subf %87, %90 : vector<8x8xf32>
    %92 = math.exp %91 : vector<8x8xf32>
    %cst_43 = arith.constant dense<0.000000e+00> : vector<8xf32>
    %93 = vector.multi_reduction <add>, %92, %cst_43 [1] : vector<8x8xf32> to vector<8xf32>
    %94 = vector.shape_cast %93 : vector<8xf32> to vector<8x1xf32>
    %95 = tpu.reciprocal %94 {approx = true} : vector<8x1xf32> -> vector<8x1xf32>
    %96 = vector.broadcast %95 : vector<8x1xf32> to vector<8x8xf32>
    %97 = arith.mulf %92, %96 : vector<8x8xf32>
    %c0_44 = arith.constant 0 : index
    %c0_45 = arith.constant 0 : index
    %98 = vector.load %arg9[%c0_44, %c0_45] : memref<8x8xf32, #tpu.memory_space<vmem>>, vector<8x8xf32>
    %99 = arith.addf %98, %97 : vector<8x8xf32>
    %c0_46 = arith.constant 0 : index
    %c0_47 = arith.constant 0 : index
    %100 = vector.load %arg9[%c0_46, %c0_47] : memref<8x8xf32, #tpu.memory_space<vmem>>, vector<8x8xf32>
    tpu.vector_store %arg9[%c0_46, %c0_47], %99 {strides = array<i32>} : memref<8x8xf32, #tpu.memory_space<vmem>>, vector<8x8xf32>,
    %101 = arith.truncf %97 : vector<8x8xf32> to vector<8x8xbf16>
    %cst_48 = arith.constant dense<0.000000e+00> : vector<8x8xf32>
    %102 = tpu.matmul %101, %86, %cst_48 {dimension_numbers = #tpu.dot_dimension_numbers<[1], [0], [0], [1], [0, 0, 1, 1], [], []>} : vector<8x8xbf16>, vector<8x8xbf16>, vector<8x8xf32> -> vector<8x8xf32>
    %c0_49 = arith.constant 0 : index
    %c24 = arith.constant 24 : index
    %103 = vector.load %arg8[%c0_49, %c24] : memref<8x32xf32, #tpu.memory_space<vmem>>, vector<8x8xf32>
    tpu.vector_store %arg8[%c0_49, %c24], %102 {strides = array<i32>} : memref<8x32xf32, #tpu.memory_space<vmem>>, vector<8x8xf32>,
    %c0_50 = arith.constant 0 : index
    %c0_51 = arith.constant 0 : index
    %104 = vector.load %arg8[%c0_50, %c0_51] : memref<8x32xf32, #tpu.memory_space<vmem>>, vector<8x32xf32>
    %105 = arith.truncf %104 : vector<8x32xf32> to vector<8x32xbf16>
    %cst_52 = arith.constant dense<0.000000e+00> : vector<8x32xf32>
    %106 = tpu.matmul %105, %1, %cst_52 {dimension_numbers = #tpu.dot_dimension_numbers<[1], [0], [0], [1], [0, 0, 1, 1], [], []>} : vector<8x32xbf16>, vector<32x32xbf16>, vector<8x32xf32> -> vector<8x32xf32>
    %107 = vector.broadcast %3 : vector<1x32xf32> to vector<8x32xf32>
    %108 = arith.addf %106, %107 : vector<8x32xf32>
    %c0_53 = arith.constant 0 : index
    %c0_54 = arith.constant 0 : index
    %c0_55 = arith.constant 0 : index
    %109 = vector.load %arg6[%c0_53, %c0_54, %c0_55] : memref<1x8x32xf32, #tpu.memory_space<vmem>>, vector<1x8x32xf32>
    %110 = vector.shape_cast %109 : vector<1x8x32xf32> to vector<8x32xf32>
    %111 = vector.shape_cast %108 : vector<8x32xf32> to vector<1x8x32xf32>
    tpu.vector_store %arg6[%c0_53, %c0_54, %c0_55], %111 {strides = array<i32>} : memref<1x8x32xf32, #tpu.memory_space<vmem>>, vector<1x8x32xf32>,
    %c0_56 = arith.constant 0 : index
    %c0_57 = arith.constant 0 : index
    %112 = vector.load %arg9[%c0_56, %c0_57] : memref<8x8xf32, #tpu.memory_space<vmem>>, vector<8x8xf32>
    %cst_58 = arith.constant 2.500000e-01 : f32
    %113 = vector.broadcast %cst_58 : f32 to vector<8x8xf32>
    %114 = arith.mulf %112, %113 : vector<8x8xf32>
    %c0_59 = arith.constant 0 : index
    %c0_60 = arith.constant 0 : index
    %c0_61 = arith.constant 0 : index
    %115 = vector.load %arg7[%c0_59, %c0_60, %c0_61] : memref<1x8x8xf32, #tpu.memory_space<vmem>>, vector<1x8x8xf32>
    %116 = vector.shape_cast %115 : vector<1x8x8xf32> to vector<8x8xf32>
    %117 = vector.shape_cast %114 : vector<8x8xf32> to vector<1x8x8xf32>
    tpu.vector_store %arg7[%c0_59, %c0_60, %c0_61], %117 {strides = array<i32>} : memref<1x8x8xf32, #tpu.memory_space<vmem>>, vector<1x8x8xf32>,
    return
  }
  func.func @transform_0(%arg0: i32) -> (i32, i32, i32) {
    %c0_i32 = arith.constant 0 : i32
    %c0_i32_0 = arith.constant 0 : i32
    %c0_i32_1 = arith.constant 0 : i32
    return %arg0, %c0_i32, %c0_i32_0 : i32, i32, i32
  }
  func.func @transform_1(%arg0: i32) -> (i32, i32) {
    %c0_i32 = arith.constant 0 : i32
    %c0_i32_0 = arith.constant 0 : i32
    %c0_i32_1 = arith.constant 0 : i32
    return %c0_i32, %c0_i32_0 : i32, i32
  }
  func.func @transform_2(%arg0: i32) -> (i32, i32) {
    %c0_i32 = arith.constant 0 : i32
    %c0_i32_0 = arith.constant 0 : i32
    %c0_i32_1 = arith.constant 0 : i32
    return %c0_i32, %c0_i32_0 : i32, i32
  }
  func.func @transform_3(%arg0: i32) -> (i32, i32) {
    %c0_i32 = arith.constant 0 : i32
    %c0_i32_0 = arith.constant 0 : i32
    %c0_i32_1 = arith.constant 0 : i32
    return %c0_i32, %c0_i32_0 : i32, i32
  }
  func.func @transform_4(%arg0: i32) -> (i32, i32) {
    %c0_i32 = arith.constant 0 : i32
    %c0_i32_0 = arith.constant 0 : i32
    %c0_i32_1 = arith.constant 0 : i32
    return %c0_i32, %c0_i32_0 : i32, i32
  }
  func.func @transform_5(%arg0: i32) -> (i32, i32, i32) {
    %c0_i32 = arith.constant 0 : i32
    %c0_i32_0 = arith.constant 0 : i32
    %c0_i32_1 = arith.constant 0 : i32
    return %arg0, %c0_i32, %c0_i32_0 : i32, i32, i32
  }
  func.func @transform_6(%arg0: i32) -> (i32, i32, i32) {
    %c0_i32 = arith.constant 0 : i32
    %c0_i32_0 = arith.constant 0 : i32
    %c0_i32_1 = arith.constant 0 : i32
    return %arg0, %c0_i32, %c0_i32_0 : i32, i32, i32
  }
}

module attributes {stable_mosaic.version = 11 : i64} {
  func.func @kernel(%arg0: i32, %arg1: memref<1x8x32xf32, #tpu.memory_space<vmem>>, %arg2: memref<32x96xbf16, #tpu.memory_space<vmem>>, %arg3: memref<1x96xf32, #tpu.memory_space<vmem>>, %arg4: memref<32x32xbf16, #tpu.memory_space<vmem>>, %arg5: memref<1x32xf32, #tpu.memory_space<vmem>>, %arg6: memref<1x8x32xf32, #tpu.memory_space<vmem>>, %arg7: memref<1x8x8xf32, #tpu.memory_space<vmem>>, %arg8: memref<8x32xf32, #tpu.memory_space<vmem>>, %arg9: memref<8x8xf32, #tpu.memory_space<vmem>>) attributes {dimension_semantics = [#tpu.dimension_semantics<parallel>], iteration_bounds = array<i64: 2>, scalar_prefetch = 0 : i64, scratch_operands = 2 : i64, tpu.core_type = #tpu.core_type<tc>, window_params = [{transform_indices = @transform_0, window_bounds = array<i64: 1, 8, 32>}, {pipeline_mode = #tpu.pipeline_mode<synchronous>, transform_indices = @transform_1, window_bounds = array<i64: 32, 96>}, {pipeline_mode = #tpu.pipeline_mode<synchronous>, transform_indices = @transform_2, window_bounds = array<i64: 1, 96>}, {pipeline_mode = #tpu.pipeline_mode<synchronous>, transform_indices = @transform_3, window_bounds = array<i64: 32, 32>}, {pipeline_mode = #tpu.pipeline_mode<synchronous>, transform_indices = @transform_4, window_bounds = array<i64: 1, 32>}, {transform_indices = @transform_5, window_bounds = array<i64: 1, 8, 32>}, {transform_indices = @transform_6, window_bounds = array<i64: 1, 8, 8>}]} {
    %c0 = arith.constant 0 : index
    %c0_0 = arith.constant 0 : index
    %0 = vector.load %arg2[%c0, %c0_0] : memref<32x96xbf16, #tpu.memory_space<vmem>>, vector<32x96xbf16>
    %c0_1 = arith.constant 0 : index
    %c0_2 = arith.constant 0 : index
    %1 = vector.load %arg4[%c0_1, %c0_2] : memref<32x32xbf16, #tpu.memory_space<vmem>>, vector<32x32xbf16>
    %c0_3 = arith.constant 0 : index
    %c0_4 = arith.constant 0 : index
    %2 = vector.load %arg3[%c0_3, %c0_4] : memref<1x96xf32, #tpu.memory_space<vmem>>, vector<1x96xf32>
    %c0_5 = arith.constant 0 : index
    %c0_6 = arith.constant 0 : index
    %3 = vector.load %arg5[%c0_5, %c0_6] : memref<1x32xf32, #tpu.memory_space<vmem>>, vector<1x32xf32>
    %c0_7 = arith.constant 0 : index
    %c0_8 = arith.constant 0 : index
    %c0_9 = arith.constant 0 : index
    %4 = vector.load %arg1[%c0_7, %c0_8, %c0_9] : memref<1x8x32xf32, #tpu.memory_space<vmem>>, vector<1x8x32xf32>
    %5 = vector.shape_cast %4 : vector<1x8x32xf32> to vector<8x32xf32>
    %6 = arith.truncf %5 : vector<8x32xf32> to vector<8x32xbf16>
    %cst = arith.constant dense<0.000000e+00> : vector<8x96xf32>
    %7 = tpu.matmul %6, %0, %cst {dimension_numbers = #tpu.dot_dimension_numbers<[1], [0], [0], [1], [0, 0, 1, 1], [], []>} : vector<8x32xbf16>, vector<32x96xbf16>, vector<8x96xf32> -> vector<8x96xf32>
    %8 = vector.broadcast %2 : vector<1x96xf32> to vector<8x96xf32>
    %9 = arith.addf %7, %8 : vector<8x96xf32>
    %cst_10 = arith.constant 0.000000e+00 : f32
    %10 = vector.broadcast %cst_10 : f32 to vector<8x8xf32>
    %c0_11 = arith.constant 0 : index
    %c0_12 = arith.constant 0 : index
    %11 = vector.load %arg9[%c0_11, %c0_12] : memref<8x8xf32, #tpu.memory_space<vmem>>, vector<8x8xf32>
    tpu.vector_store %arg9[%c0_11, %c0_12], %10 {strides = array<i32>} : memref<8x8xf32, #tpu.memory_space<vmem>>, vector<8x8xf32>,
    %12 = vector.extract_strided_slice %9 {offsets = [0, 0], sizes = [8, 8], strides = [1, 1]} : vector<8x96xf32> to vector<8x8xf32>
    %13 = arith.truncf %12 : vector<8x8xf32> to vector<8x8xbf16>
    %14 = vector.extract_strided_slice %9 {offsets = [0, 32], sizes = [8, 8], strides = [1, 1]} : vector<8x96xf32> to vector<8x8xf32>
    %15 = arith.truncf %14 : vector<8x8xf32> to vector<8x8xbf16>
    %16 = vector.extract_strided_slice %9 {offsets = [0, 64], sizes = [8, 8], strides = [1, 1]} : vector<8x96xf32> to vector<8x8xf32>
    %17 = arith.truncf %16 : vector<8x8xf32> to vector<8x8xbf16>
    %cst_13 = arith.constant dense<0.000000e+00> : vector<8x8xf32>
    %18 = tpu.matmul %13, %15, %cst_13 {dimension_numbers = #tpu.dot_dimension_numbers<[1], [1], [0], [0], [0, 0, 1, 0], [], []>} : vector<8x8xbf16>, vector<8x8xbf16>, vector<8x8xf32> -> vector<8x8xf32>
    %cst_14 = arith.constant dense<0xFF800000> : vector<8xf32>
    %19 = vector.multi_reduction <maximumf>, %18, %cst_14 [1] : vector<8x8xf32> to vector<8xf32>
    %20 = vector.shape_cast %19 : vector<8xf32> to vector<8x1xf32>
    %21 = vector.broadcast %20 : vector<8x1xf32> to vector<8x8xf32>
    %22 = arith.subf %18, %21 : vector<8x8xf32>
    %23 = math.exp %22 : vector<8x8xf32>
    %cst_15 = arith.constant dense<0.000000e+00> : vector<8xf32>
    %24 = vector.multi_reduction <add>, %23, %cst_15 [1] : vector<8x8xf32> to vector<8xf32>
    %25 = vector.shape_cast %24 : vector<8xf32> to vector<8x1xf32>
    %26 = tpu.reciprocal %25 {approx = true} : vector<8x1xf32> -> vector<8x1xf32>
    %27 = vector.broadcast %26 : vector<8x1xf32> to vector<8x8xf32>
    %28 = arith.mulf %23, %27 : vector<8x8xf32>
    %c0_16 = arith.constant 0 : index
    %c0_17 = arith.constant 0 : index
    %29 = vector.load %arg9[%c0_16, %c0_17] : memref<8x8xf32, #tpu.memory_space<vmem>>, vector<8x8xf32>
    %30 = arith.addf %29, %28 : vector<8x8xf32>
    %c0_18 = arith.constant 0 : index
    %c0_19 = arith.constant 0 : index
    %31 = vector.load %arg9[%c0_18, %c0_19] : memref<8x8xf32, #tpu.memory_space<vmem>>, vector<8x8xf32>
    tpu.vector_store %arg9[%c0_18, %c0_19], %30 {strides = array<i32>} : memref<8x8xf32, #tpu.memory_space<vmem>>, vector<8x8xf32>,
    %32 = arith.truncf %28 : vector<8x8xf32> to vector<8x8xbf16>
    %cst_20 = arith.constant dense<0.000000e+00> : vector<8x8xf32>
    %33 = tpu.matmul %32, %17, %cst_20 {dimension_numbers = #tpu.dot_dimension_numbers<[1], [0], [0], [1], [0, 0, 1, 1], [], []>} : vector<8x8xbf16>, vector<8x8xbf16>, vector<8x8xf32> -> vector<8x8xf32>
    %c0_21 = arith.constant 0 : index
    %c0_22 = arith.constant 0 : index
    %34 = vector.load %arg8[%c0_21, %c0_22] : memref<8x32xf32, #tpu.memory_space<vmem>>, vector<8x8xf32>
    tpu.vector_store %arg8[%c0_21, %c0_22], %33 {strides = array<i32>} : memref<8x32xf32, #tpu.memory_space<vmem>>, vector<8x8xf32>,
    %35 = vector.extract_strided_slice %9 {offsets = [0, 8], sizes = [8, 8], strides = [1, 1]} : vector<8x96xf32> to vector<8x8xf32>
    %36 = arith.truncf %35 : vector<8x8xf32> to vector<8x8xbf16>
    %37 = vector.extract_strided_slice %9 {offsets = [0, 40], sizes = [8, 8], strides = [1, 1]} : vector<8x96xf32> to vector<8x8xf32>
    %38 = arith.truncf %37 : vector<8x8xf32> to vector<8x8xbf16>
    %39 = vector.extract_strided_slice %9 {offsets = [0, 72], sizes = [8, 8], strides = [1, 1]} : vector<8x96xf32> to vector<8x8xf32>
    %40 = arith.truncf %39 : vector<8x8xf32> to vector<8x8xbf16>
    %cst_23 = arith.constant dense<0.000000e+00> : vector<8x8xf32>
    %41 = tpu.matmul %36, %38, %cst_23 {dimension_numbers = #tpu.dot_dimension_numbers<[1], [1], [0], [0], [0, 0, 1, 0], [], []>} : vector<8x8xbf16>, vector<8x8xbf16>, vector<8x8xf32> -> vector<8x8xf32>
    %cst_24 = arith.constant dense<0xFF800000> : vector<8xf32>
    %42 = vector.multi_reduction <maximumf>, %41, %cst_24 [1] : vector<8x8xf32> to vector<8xf32>
    %43 = vector.shape_cast %42 : vector<8xf32> to vector<8x1xf32>
    %44 = vector.broadcast %43 : vector<8x1xf32> to vector<8x8xf32>
    %45 = arith.subf %41, %44 : vector<8x8xf32>
    %46 = math.exp %45 : vector<8x8xf32>
    %cst_25 = arith.constant dense<0.000000e+00> : vector<8xf32>
    %47 = vector.multi_reduction <add>, %46, %cst_25 [1] : vector<8x8xf32> to vector<8xf32>
    %48 = vector.shape_cast %47 : vector<8xf32> to vector<8x1xf32>
    %49 = tpu.reciprocal %48 {approx = true} : vector<8x1xf32> -> vector<8x1xf32>
    %50 = vector.broadcast %49 : vector<8x1xf32> to vector<8x8xf32>
    %51 = arith.mulf %46, %50 : vector<8x8xf32>
    %c0_26 = arith.constant 0 : index
    %c0_27 = arith.constant 0 : index
    %52 = vector.load %arg9[%c0_26, %c0_27] : memref<8x8xf32, #tpu.memory_space<vmem>>, vector<8x8xf32>
    %53 = arith.addf %52, %51 : vector<8x8xf32>
    %c0_28 = arith.constant 0 : index
    %c0_29 = arith.constant 0 : index
    %54 = vector.load %arg9[%c0_28, %c0_29] : memref<8x8xf32, #tpu.memory_space<vmem>>, vector<8x8xf32>
    tpu.vector_store %arg9[%c0_28, %c0_29], %53 {strides = array<i32>} : memref<8x8xf32, #tpu.memory_space<vmem>>, vector<8x8xf32>,
    %55 = arith.truncf %51 : vector<8x8xf32> to vector<8x8xbf16>
    %cst_30 = arith.constant dense<0.000000e+00> : vector<8x8xf32>
    %56 = tpu.matmul %55, %40, %cst_30 {dimension_numbers = #tpu.dot_dimension_numbers<[1], [0], [0], [1], [0, 0, 1, 1], [], []>} : vector<8x8xbf16>, vector<8x8xbf16>, vector<8x8xf32> -> vector<8x8xf32>
    %c0_31 = arith.constant 0 : index
    %c8 = arith.constant 8 : index
    %57 = vector.load %arg8[%c0_31, %c8] : memref<8x32xf32, #tpu.memory_space<vmem>>, vector<8x8xf32>
    tpu.vector_store %arg8[%c0_31, %c8], %56 {strides = array<i32>} : memref<8x32xf32, #tpu.memory_space<vmem>>, vector<8x8xf32>,
    %58 = vector.extract_strided_slice %9 {offsets = [0, 16], sizes = [8, 8], strides = [1, 1]} : vector<8x96xf32> to vector<8x8xf32>
    %59 = arith.truncf %58 : vector<8x8xf32> to vector<8x8xbf16>
    %60 = vector.extract_strided_slice %9 {offsets = [0, 48], sizes = [8, 8], strides = [1, 1]} : vector<8x96xf32> to vector<8x8xf32>
    %61 = arith.truncf %60 : vector<8x8xf32> to vector<8x8xbf16>
    %62 = vector.extract_strided_slice %9 {offsets = [0, 80], sizes = [8, 8], strides = [1, 1]} : vector<8x96xf32> to vector<8x8xf32>
    %63 = arith.truncf %62 : vector<8x8xf32> to vector<8x8xbf16>
    %cst_32 = arith.constant dense<0.000000e+00> : vector<8x8xf32>
    %64 = tpu.matmul %59, %61, %cst_32 {dimension_numbers = #tpu.dot_dimension_numbers<[1], [1], [0], [0], [0, 0, 1, 0], [], []>} : vector<8x8xbf16>, vector<8x8xbf16>, vector<8x8xf32> -> vector<8x8xf32>
    %cst_33 = arith.constant dense<0xFF800000> : vector<8xf32>
    %65 = vector.multi_reduction <maximumf>, %64, %cst_33 [1] : vector<8x8xf32> to vector<8xf32>
    %66 = vector.shape_cast %65 : vector<8xf32> to vector<8x1xf32>
    %67 = vector.broadcast %66 : vector<8x1xf32> to vector<8x8xf32>
    %68 = arith.subf %64, %67 : vector<8x8xf32>
    %69 = math.exp %68 : vector<8x8xf32>
    %cst_34 = arith.constant dense<0.000000e+00> : vector<8xf32>
    %70 = vector.multi_reduction <add>, %69, %cst_34 [1] : vector<8x8xf32> to vector<8xf32>
    %71 = vector.shape_cast %70 : vector<8xf32> to vector<8x1xf32>
    %72 = tpu.reciprocal %71 {approx = true} : vector<8x1xf32> -> vector<8x1xf32>
    %73 = vector.broadcast %72 : vector<8x1xf32> to vector<8x8xf32>
    %74 = arith.mulf %69, %73 : vector<8x8xf32>
    %c0_35 = arith.constant 0 : index
    %c0_36 = arith.constant 0 : index
    %75 = vector.load %arg9[%c0_35, %c0_36] : memref<8x8xf32, #tpu.memory_space<vmem>>, vector<8x8xf32>
    %76 = arith.addf %75, %74 : vector<8x8xf32>
    %c0_37 = arith.constant 0 : index
    %c0_38 = arith.constant 0 : index
    %77 = vector.load %arg9[%c0_37, %c0_38] : memref<8x8xf32, #tpu.memory_space<vmem>>, vector<8x8xf32>
    tpu.vector_store %arg9[%c0_37, %c0_38], %76 {strides = array<i32>} : memref<8x8xf32, #tpu.memory_space<vmem>>, vector<8x8xf32>,
    %78 = arith.truncf %74 : vector<8x8xf32> to vector<8x8xbf16>
    %cst_39 = arith.constant dense<0.000000e+00> : vector<8x8xf32>
    %79 = tpu.matmul %78, %63, %cst_39 {dimension_numbers = #tpu.dot_dimension_numbers<[1], [0], [0], [1], [0, 0, 1, 1], [], []>} : vector<8x8xbf16>, vector<8x8xbf16>, vector<8x8xf32> -> vector<8x8xf32>
    %c0_40 = arith.constant 0 : index
    %c16 = arith.constant 16 : index
    %80 = vector.load %arg8[%c0_40, %c16] : memref<8x32xf32, #tpu.memory_space<vmem>>, vector<8x8xf32>
    tpu.vector_store %arg8[%c0_40, %c16], %79 {strides = array<i32>} : memref<8x32xf32, #tpu.memory_space<vmem>>, vector<8x8xf32>,
    %81 = vector.extract_strided_slice %9 {offsets = [0, 24], sizes = [8, 8], strides = [1, 1]} : vector<8x96xf32> to vector<8x8xf32>
    %82 = arith.truncf %81 : vector<8x8xf32> to vector<8x8xbf16>
    %83 = vector.extract_strided_slice %9 {offsets = [0, 56], sizes = [8, 8], strides = [1, 1]} : vector<8x96xf32> to vector<8x8xf32>
    %84 = arith.truncf %83 : vector<8x8xf32> to vector<8x8xbf16>
    %85 = vector.extract_strided_slice %9 {offsets = [0, 88], sizes = [8, 8], strides = [1, 1]} : vector<8x96xf32> to vector<8x8xf32>
    %86 = arith.truncf %85 : vector<8x8xf32> to vector<8x8xbf16>
    %cst_41 = arith.constant dense<0.000000e+00> : vector<8x8xf32>
    %87 = tpu.matmul %82, %84, %cst_41 {dimension_numbers = #tpu.dot_dimension_numbers<[1], [1], [0], [0], [0, 0, 1, 0], [], []>} : vector<8x8xbf16>, vector<8x8xbf16>, vector<8x8xf32> -> vector<8x8xf32>
    %cst_42 = arith.constant dense<0xFF800000> : vector<8xf32>
    %88 = vector.multi_reduction <maximumf>, %87, %cst_42 [1] : vector<8x8xf32> to vector<8xf32>
    %89 = vector.shape_cast %88 : vector<8xf32> to vector<8x1xf32>
    %90 = vector.broadcast %89 : vector<8x1xf32> to vector<8x8xf32>
    %91 = arith.subf %87, %90 : vector<8x8xf32>
    %92 = math.exp %91 : vector<8x8xf32>
    %cst_43 = arith.constant dense<0.000000e+00> : vector<8xf32>
    %93 = vector.multi_reduction <add>, %92, %cst_43 [1] : vector<8x8xf32> to vector<8xf32>
    %94 = vector.shape_cast %93 : vector<8xf32> to vector<8x1xf32>
    %95 = tpu.reciprocal %94 {approx = true} : vector<8x1xf32> -> vector<8x1xf32>
    %96 = vector.broadcast %95 : vector<8x1xf32> to vector<8x8xf32>
    %97 = arith.mulf %92, %96 : vector<8x8xf32>
    %c0_44 = arith.constant 0 : index
    %c0_45 = arith.constant 0 : index
    %98 = vector.load %arg9[%c0_44, %c0_45] : memref<8x8xf32, #tpu.memory_space<vmem>>, vector<8x8xf32>
    %99 = arith.addf %98, %97 : vector<8x8xf32>
    %c0_46 = arith.constant 0 : index
    %c0_47 = arith.constant 0 : index
    %100 = vector.load %arg9[%c0_46, %c0_47] : memref<8x8xf32, #tpu.memory_space<vmem>>, vector<8x8xf32>
    tpu.vector_store %arg9[%c0_46, %c0_47], %99 {strides = array<i32>} : memref<8x8xf32, #tpu.memory_space<vmem>>, vector<8x8xf32>,
    %101 = arith.truncf %97 : vector<8x8xf32> to vector<8x8xbf16>
    %cst_48 = arith.constant dense<0.000000e+00> : vector<8x8xf32>
    %102 = tpu.matmul %101, %86, %cst_48 {dimension_numbers = #tpu.dot_dimension_numbers<[1], [0], [0], [1], [0, 0, 1, 1], [], []>} : vector<8x8xbf16>, vector<8x8xbf16>, vector<8x8xf32> -> vector<8x8xf32>
    %c0_49 = arith.constant 0 : index
    %c24 = arith.constant 24 : index
    %103 = vector.load %arg8[%c0_49, %c24] : memref<8x32xf32, #tpu.memory_space<vmem>>, vector<8x8xf32>
    tpu.vector_store %arg8[%c0_49, %c24], %102 {strides = array<i32>} : memref<8x32xf32, #tpu.memory_space<vmem>>, vector<8x8xf32>,
    %c0_50 = arith.constant 0 : index
    %c0_51 = arith.constant 0 : index
    %104 = vector.load %arg8[%c0_50, %c0_51] : memref<8x32xf32, #tpu.memory_space<vmem>>, vector<8x32xf32>
    %105 = arith.truncf %104 : vector<8x32xf32> to vector<8x32xbf16>
    %cst_52 = arith.constant dense<0.000000e+00> : vector<8x32xf32>
    %106 = tpu.matmul %105, %1, %cst_52 {dimension_numbers = #tpu.dot_dimension_numbers<[1], [0], [0], [1], [0, 0, 1, 1], [], []>} : vector<8x32xbf16>, vector<32x32xbf16>, vector<8x32xf32> -> vector<8x32xf32>
    %107 = vector.broadcast %3 : vector<1x32xf32> to vector<8x32xf32>
    %108 = arith.addf %106, %107 : vector<8x32xf32>
    %c0_53 = arith.constant 0 : index
    %c0_54 = arith.constant 0 : index
    %c0_55 = arith.constant 0 : index
    %109 = vector.load %arg6[%c0_53, %c0_54, %c0_55] : memref<1x8x32xf32, #tpu.memory_space<vmem>>, vector<1x8x32xf32>
    %110 = vector.shape_cast %109 : vector<1x8x32xf32> to vector<8x32xf32>
    %111 = vector.shape_cast %108 : vector<8x32xf32> to vector<1x8x32xf32>
    tpu.vector_store %arg6[%c0_53, %c0_54, %c0_55], %111 {strides = array<i32>} : memref<1x8x32xf32, #tpu.memory_space<vmem>>, vector<1x8x32xf32>,
    %c0_56 = arith.constant 0 : index
    %c0_57 = arith.constant 0 : index
    %112 = vector.load %arg9[%c0_56, %c0_57] : memref<8x8xf32, #tpu.memory_space<vmem>>, vector<8x8xf32>
    %cst_58 = arith.constant 2.500000e-01 : f32
    %113 = vector.broadcast %cst_58 : f32 to vector<8x8xf32>
    %114 = arith.mulf %112, %113 : vector<8x8xf32>
    %c0_59 = arith.constant 0 : index
    %c0_60 = arith.constant 0 : index
    %c0_61 = arith.constant 0 : index
    %115 = vector.load %arg7[%c0_59, %c0_60, %c0_61] : memref<1x8x8xf32, #tpu.memory_space<vmem>>, vector<1x8x8xf32>
    %116 = vector.shape_cast %115 : vector<1x8x8xf32> to vector<8x8xf32>
    %117 = vector.shape_cast %114 : vector<8x8xf32> to vector<1x8x8xf32>
    tpu.vector_store %arg7[%c0_59, %c0_60, %c0_61], %117 {strides = array<i32>} : memref<1x8x8xf32, #tpu.memory_space<vmem>>, vector<1x8x8xf32>,
    return
  }
  func.func @transform_0(%arg0: i32) -> (i32, i32, i32) {
    %c0_i32 = arith.constant 0 : i32
    %c0_i32_0 = arith.constant 0 : i32
    %c0_i32_1 = arith.constant 0 : i32
    return %arg0, %c0_i32, %c0_i32_0 : i32, i32, i32
  }
  func.func @transform_1(%arg0: i32) -> (i32, i32) {
    %c0_i32 = arith.constant 0 : i32
    %c0_i32_0 = arith.constant 0 : i32
    %c0_i32_1 = arith.constant 0 : i32
    return %c0_i32, %c0_i32_0 : i32, i32
  }
  func.func @transform_2(%arg0: i32) -> (i32, i32) {
    %c0_i32 = arith.constant 0 : i32
    %c0_i32_0 = arith.constant 0 : i32
    %c0_i32_1 = arith.constant 0 : i32
    return %c0_i32, %c0_i32_0 : i32, i32
  }
  func.func @transform_3(%arg0: i32) -> (i32, i32) {
    %c0_i32 = arith.constant 0 : i32
    %c0_i32_0 = arith.constant 0 : i32
    %c0_i32_1 = arith.constant 0 : i32
    return %c0_i32, %c0_i32_0 : i32, i32
  }
  func.func @transform_4(%arg0: i32) -> (i32, i32) {
    %c0_i32 = arith.constant 0 : i32
    %c0_i32_0 = arith.constant 0 : i32
    %c0_i32_1 = arith.constant 0 : i32
    return %c0_i32, %c0_i32_0 : i32, i32
  }
  func.func @transform_5(%arg0: i32) -> (i32, i32, i32) {
    %c0_i32 = arith.constant 0 : i32
    %c0_i32_0 = arith.constant 0 : i32
    %c0_i32_1 = arith.constant 0 : i32
    return %arg0, %c0_i32, %c0_i32_0 : i32, i32, i32
  }
  func.func @transform_6(%arg0: i32) -> (i32, i32, i32) {
    %c0_i32 = arith.constant 0 : i32
    %c0_i32_0 = arith.constant 0 : i32
    %c0_i32_1 = arith.constant 0 : i32
    return %arg0, %c0_i32, %c0_i32_0 : i32, i32, i32
  }
}

</mosaic_0001>

<llo_original>
// kernel: tpu_custom_call.1
$region0: #{tpu_custom_call.1}
  #allocation0 [shape = 'u32[]', space=smem, size = 0x4, offset = 0x4, fixed_abs, tag = 'smem constant byte address 0x4 - core index']
  #allocation1 [shape = 'u32[144,128]{1,0:T(1,128)}', space=vmem, size = 0x12000, scoped, tag = 'internal scratch']
  #allocation2 [shape = 'f32[8,32]{1,0:T(8,128)}', space=vmem, size = 0x1000, scoped, tag = 'scratch operand']
  #allocation3 [shape = 'f32[8,8]{1,0:T(8,128)}', space=vmem, size = 0x1000, scoped, tag = 'scratch operand']
  %s0 = inlined_call_operand.hbm [shape: f32[2,8,32], index: 0, kind: input, shape index: {}]
  %s1 = inlined_call_operand.hbm [shape: bf16[32,96], index: 1, kind: input, shape index: {}]
  %s2 = inlined_call_operand.vmem [shape: f32[1,96], index: 2, kind: input, shape index: {}]
  %s3 = inlined_call_operand.hbm [shape: bf16[32,32], index: 3, kind: input, shape index: {}]
  %s4 = inlined_call_operand.vmem [shape: f32[1,32], index: 4, kind: input, shape index: {}]
  %s5 = inlined_call_operand.hbm [shape: f32[2,8,32], index: 5, kind: output, shape index: {0}]
  %s6 = inlined_call_operand.hbm [shape: f32[2,8,8], index: 6, kind: output, shape index: {1}]
  %7 = xla_tuple %s5, %s6
  %s8 = sld [smem:[#allocation0]]
  $region73: #{tpu_custom_call.1} parent=0
    _
  %s10 = ssub.s32 1, %s8
  %s11 = scalar_select 0, %s10, %s8
  $region1: #{tpu_custom_call.1} parent=0
    #allocation4 [shape = 'u8[8192]{0}', space=vmem, size = 0x2000, scoped, tag = 'input window, operand 0']
    #allocation5 [shape = 's32[2]{0}', space=sflag, size = 0x8, scoped, tag = 'scoped memory for tpu_custom_call.1']
    #allocation6 [shape = 's32[2]{0}', space=sflag, size = 0x8, scoped, tag = 'scoped memory for tpu_custom_call.1']
    #allocation7 [shape = 'u8[8192]{0}', space=vmem, size = 0x2000, scoped, tag = 'input window, operand 1, single buffered']
    #allocation8 [shape = 's32[1]{0}', space=sflag, size = 0x4, scoped, tag = 'scoped memory for tpu_custom_call.1']
    #allocation9 [shape = 'u8[8192]{0}', space=vmem, size = 0x2000, scoped, tag = 'input window, operand 3, single buffered']
    #allocation10 [shape = 'u8[8192]{0}', space=vmem, size = 0x2000, scoped, tag = 'output window, operand 0']
    #allocation11 [shape = 'u8[8192]{0}', space=vmem, size = 0x2000, scoped, tag = 'output window, operand 1']
    #allocation12 [shape = 's32[2]{0}', space=sflag, size = 0x8, scoped, tag = 'scoped memory for tpu_custom_call.1']
    %12 = vsyncpa [#allocation5], 0
    %s13 = scalar_lea.sflag [#allocation5], 1
    %14 = vsyncpa %s13, 0
    %15 = vsyncpa [#allocation8], 0
    %16 = vsyncpa [#allocation6], 0
    %s17 = scalar_lea.sflag [#allocation6], 1
    %18 = vsyncpa %s17, 0
    %19 = vsyncpa [#allocation12], 0
    %s20 = scalar_lea.sflag [#allocation12], 1
    %21 = vsyncpa %s20, 0
    loop: start=0, step=1, limit=4
    $region2: #{tpu_custom_call.1} parent=1 // loop_pre_header
      _
    $region3: #{tpu_custom_call.1} parent=1 // loop_header
      %s23 = sphi 0, %s27
      %p24 = scmp.ge.s32.totalorder %s23, 4
      %s33 = sphi 0, %s35
      %s36 = sphi 0, %s33
      %s37 = sphi 0, %s36
      %s53 = sphi 0, %s37
      %s57 = sphi 0, %s57
      %s59 = sphi 0, %s57
      %s60 = sphi 0, %s59
      %s74 = sphi 0, %s60
      %s78 = sphi 0, %s78
      %s80 = sphi 0, %s78
      %s81 = sphi 0, %s80
      %s95 = sphi 0, %s81
      %s99 = sphi 0, %s99
      %s101 = sphi 0, %s99
      %s102 = sphi 0, %s101
      %s116 = sphi 0, %s102
      %s120 = sphi 0, %s120
      %s122 = sphi 0, %s120
      %s123 = sphi 0, %s122
      %s137 = sphi 0, %s123
      %s143 = sphi 0, %s145
      %s146 = sphi 0, %s143
      %s147 = sphi 0, %s146
      %s163 = sphi 0, %s147
      %s169 = sphi 0, %s171
      %s172 = sphi 0, %s169
      %s173 = sphi 0, %s172
      %s189 = sphi 0, %s173
    $region4: #{tpu_custom_call.1} parent=1 // loop_header_branch
      %26 = sbr.rel (%p24) target = $region8
    $region5: #{tpu_custom_call.1} parent=1 // loop_body
      %s28 = ssub.s32 %s23, 1
      %s29 = ssub.s32 %s23, 2
      %s30 = sadd.s32 %s23, 1
      %s31 = ssub.s32 %s23, %s30
      %p32 = scmp.eq.s32.totalorder %s31, 0
      %s34 = sadd.s32 %s33, 1
      %s35 = scalar_select %p32, %s33, %s34
      %p38 = pneg %p32
      %p39 = scmp.eq.s32.totalorder %s23, 1
      %p40 = por %p38, %p39
      %p41 = scmp.ne.s32.totalorder %s33, %s36
      %p42 = scmp.eq.s32.totalorder %s23, 0
      %p43 = por %p41, %p42
      %p44 = scmp.ne.s32.totalorder %s33, %s36
      %p45 = scmp.eq.s32.totalorder %s28, 1
      %p46 = por %p44, %p45
      %p47 = scmp.ne.s32.totalorder %s36, %s37
      %p48 = scmp.eq.s32.totalorder %s28, 0
      %p49 = por %p47, %p48
      %p50 = scmp.ne.s32.totalorder %s36, %s37
      %p51 = scmp.eq.s32.totalorder %s29, 1
      %p52 = por %p50, %p51
      %p54 = scmp.ne.s32.totalorder %s37, %s53
      %p55 = scmp.eq.s32.totalorder %s29, 0
      %p56 = por %p54, %p55
      %s58 = sadd.s32 %s57, 1
      %p61 = scmp.eq.s32.totalorder %s23, 1
      %p62 = scmp.ne.s32.totalorder %s57, %s59
      %p63 = scmp.eq.s32.totalorder %s23, 0
      %p64 = por %p62, %p63
      %p65 = scmp.ne.s32.totalorder %s57, %s59
      %p66 = scmp.eq.s32.totalorder %s28, 1
      %p67 = por %p65, %p66
      %p68 = scmp.ne.s32.totalorder %s59, %s60
      %p69 = scmp.eq.s32.totalorder %s28, 0
      %p70 = por %p68, %p69
      %p71 = scmp.ne.s32.totalorder %s59, %s60
      %p72 = scmp.eq.s32.totalorder %s29, 1
      %p73 = por %p71, %p72
      %p75 = scmp.ne.s32.totalorder %s60, %s74
      %p76 = scmp.eq.s32.totalorder %s29, 0
      %p77 = por %p75, %p76
      %s79 = sadd.s32 %s78, 1
      %p82 = scmp.eq.s32.totalorder %s23, 1
      %p83 = scmp.ne.s32.totalorder %s78, %s80
      %p84 = scmp.eq.s32.totalorder %s23, 0
      %p85 = por %p83, %p84
      %p86 = scmp.ne.s32.totalorder %s78, %s80
      %p87 = scmp.eq.s32.totalorder %s28, 1
      %p88 = por %p86, %p87
      %p89 = scmp.ne.s32.totalorder %s80, %s81
      %p90 = scmp.eq.s32.totalorder %s28, 0
      %p91 = por %p89, %p90
      %p92 = scmp.ne.s32.totalorder %s80, %s81
      %p93 = scmp.eq.s32.totalorder %s29, 1
      %p94 = por %p92, %p93
      %p96 = scmp.ne.s32.totalorder %s81, %s95
      %p97 = scmp.eq.s32.totalorder %s29, 0
      %p98 = por %p96, %p97
      %s100 = sadd.s32 %s99, 1
      %p103 = scmp.eq.s32.totalorder %s23, 1
      %p104 = scmp.ne.s32.totalorder %s99, %s101
      %p105 = scmp.eq.s32.totalorder %s23, 0
      %p106 = por %p104, %p105
      %p107 = scmp.ne.s32.totalorder %s99, %s101
      %p108 = scmp.eq.s32.totalorder %s28, 1
      %p109 = por %p107, %p108
      %p110 = scmp.ne.s32.totalorder %s101, %s102
      %p111 = scmp.eq.s32.totalorder %s28, 0
      %p112 = por %p110, %p111
      %p113 = scmp.ne.s32.totalorder %s101, %s102
      %p114 = scmp.eq.s32.totalorder %s29, 1
      %p115 = por %p113, %p114
      %p117 = scmp.ne.s32.totalorder %s102, %s116
      %p118 = scmp.eq.s32.totalorder %s29, 0
      %p119 = por %p117, %p118
      %s121 = sadd.s32 %s120, 1
      %p124 = scmp.eq.s32.totalorder %s23, 1
      %p125 = scmp.ne.s32.totalorder %s120, %s122
      %p126 = scmp.eq.s32.totalorder %s23, 0
      %p127 = por %p125, %p126
      %p128 = scmp.ne.s32.totalorder %s120, %s122
      %p129 = scmp.eq.s32.totalorder %s28, 1
      %p130 = por %p128, %p129
      %p131 = scmp.ne.s32.totalorder %s122, %s123
      %p132 = scmp.eq.s32.totalorder %s28, 0
      %p133 = por %p131, %p132
      %p134 = scmp.ne.s32.totalorder %s122, %s123
      %p135 = scmp.eq.s32.totalorder %s29, 1
      %p136 = por %p134, %p135
      %p138 = scmp.ne.s32.totalorder %s123, %s137
      %p139 = scmp.eq.s32.totalorder %s29, 0
      %p140 = por %p138, %p139
      %s141 = ssub.s32 %s23, %s30
      %p142 = scmp.eq.s32.totalorder %s141, 0
      %s144 = sadd.s32 %s143, 1
      %s145 = scalar_select %p142, %s143, %s144
      %p148 = pneg %p142
      %p149 = scmp.eq.s32.totalorder %s23, 1
      %p150 = por %p148, %p149
      %p151 = scmp.ne.s32.totalorder %s143, %s146
      %p152 = scmp.eq.s32.totalorder %s23, 0
      %p153 = por %p151, %p152
      %p154 = scmp.ne.s32.totalorder %s143, %s146
      %p155 = scmp.eq.s32.totalorder %s28, 1
      %p156 = por %p154, %p155
      %p157 = scmp.ne.s32.totalorder %s146, %s147
      %p158 = scmp.eq.s32.totalorder %s28, 0
      %p159 = por %p157, %p158
      %p160 = scmp.ne.s32.totalorder %s146, %s147
      %p161 = scmp.eq.s32.totalorder %s29, 1
      %p162 = por %p160, %p161
      %p164 = scmp.ne.s32.totalorder %s147, %s163
      %p165 = scmp.eq.s32.totalorder %s29, 0
      %p166 = por %p164, %p165
      %s167 = ssub.s32 %s23, %s30
      %p168 = scmp.eq.s32.totalorder %s167, 0
      %s170 = sadd.s32 %s169, 1
      %s171 = scalar_select %p168, %s169, %s170
      %p174 = pneg %p168
      %p175 = scmp.eq.s32.totalorder %s23, 1
      %p176 = por %p174, %p175
      %p177 = scmp.ne.s32.totalorder %s169, %s172
      %p178 = scmp.eq.s32.totalorder %s23, 0
      %p179 = por %p177, %p178
      %p180 = scmp.ne.s32.totalorder %s169, %s172
      %p181 = scmp.eq.s32.totalorder %s28, 1
      %p182 = por %p180, %p181
      %p183 = scmp.ne.s32.totalorder %s172, %s173
      %p184 = scmp.eq.s32.totalorder %s28, 0
      %p185 = por %p183, %p184
      %p186 = scmp.ne.s32.totalorder %s172, %s173
      %p187 = scmp.eq.s32.totalorder %s29, 1
      %p188 = por %p186, %p187
      %p190 = scmp.ne.s32.totalorder %s173, %s189
      %p191 = scmp.eq.s32.totalorder %s29, 0
      %p192 = por %p190, %p191
      %p193 = scmp.le.s32.totalorder 1, %s23
      %p194 = scmp.lt.s32.totalorder %s23, 3
      %p195 = pnand %p193, %p194
      %p196 = pneg %p195
      // Predicated region
      $region9: #{tpu_custom_call.1} parent=5 // pred_check
        _
      $region10: #{tpu_custom_call.1} parent=5 // pred_check_branch
        %198 = sbr.rel (%p195) target = $region12
      $region11: #{tpu_custom_call.1} parent=5 // pred_region
        %s199 = ssub.s32 %s23, 1
        // Predicated region
        $region13: #{tpu_custom_call.1} parent=11 // pred_check
          %p200 = pneg %p70
        $region14: #{tpu_custom_call.1} parent=11 // pred_check_branch
          %202 = sbr.rel (%p200) target = $region16
        $region15: #{tpu_custom_call.1} parent=11 // pred_region
          %s204 = ssub.s32 256, 256
          %205 = vsyncadd [#allocation8], %s204
          %s206 = sshll.u32 [#allocation7], 4
          %s207 = int_to_ptr.vmem [resolvable:$true] %s206
          %212 = dma.hbm_to_vmem [thread:$0]  %s1, 256, %s207, [#allocation8], 64, 64, 4
        $region16: #{tpu_custom_call.1} parent=11 // pred_fallthru
          _
        // Predicated region
        $region17: #{tpu_custom_call.1} parent=11 // pred_check
          %p213 = pneg %p91
        $region18: #{tpu_custom_call.1} parent=11 // pred_check_branch
          %215 = sbr.rel (%p213) target = $region20
        $region19: #{tpu_custom_call.1} parent=11 // pred_region
          _
        $region20: #{tpu_custom_call.1} parent=11 // pred_fallthru
          _
        // Predicated region
        $region21: #{tpu_custom_call.1} parent=11 // pred_check
          %p216 = pneg %p112
        $region22: #{tpu_custom_call.1} parent=11 // pred_check_branch
          %218 = sbr.rel (%p216) target = $region24
        $region23: #{tpu_custom_call.1} parent=11 // pred_region
          %s220 = ssub.s32 256, 256
          %221 = vsyncadd [#allocation8], %s220
          %s222 = sshll.u32 [#allocation9], 4
          %s223 = int_to_ptr.vmem [resolvable:$true] %s222
          %228 = dma.hbm_to_vmem [thread:$0]  %s3, 256, %s223, [#allocation8], 64, 64, 4
        $region24: #{tpu_custom_call.1} parent=11 // pred_fallthru
          _
        // Predicated region
        $region25: #{tpu_custom_call.1} parent=11 // pred_check
          %p229 = pneg %p133
        $region26: #{tpu_custom_call.1} parent=11 // pred_check_branch
          %231 = sbr.rel (%p229) target = $region28
        $region27: #{tpu_custom_call.1} parent=11 // pred_region
          _
        $region28: #{tpu_custom_call.1} parent=11 // pred_fallthru
          _
      $region12: #{tpu_custom_call.1} parent=5 // pred_fallthru
        _
      %p232 = scmp.lt.s32.totalorder %s23, 2
      // Predicated region
      $region29: #{tpu_custom_call.1} parent=5 // pred_check
        %p233 = pneg %p232
      $region30: #{tpu_custom_call.1} parent=5 // pred_check_branch
        %235 = sbr.rel (%p233) target = $region32
      $region31: #{tpu_custom_call.1} parent=5 // pred_region
        // Predicated region
        $region33: #{tpu_custom_call.1} parent=31 // pred_check
          %p236 = pneg %p43
        $region34: #{tpu_custom_call.1} parent=31 // pred_check_branch
          %238 = sbr.rel (%p236) target = $region36
        $region35: #{tpu_custom_call.1} parent=31 // pred_region
          %s239 = sand.u32 %s33, 1
          %s240 = scalar_lea.sflag [#allocation5], %s239
          %s241 = sand.u32 %s33, 1
          %s242 = smul.addr %s241, 8
          %s243 = scalar_lea.vmem [#allocation4], %s242
          %s245 = ssub.s32 128, 128
          %246 = vsyncadd %s240, %s245
          %s247 = smul.addr %s23, 128
          %s248 = scalar_lea.hbm %s0, %s247
          %s250 = sshll.u32 %s243, 4
          %s251 = int_to_ptr.vmem [resolvable:$true] %s250
          %253 = dma.hbm_to_vmem [thread:$0]  %s248, 128, %s251, %s240
        $region36: #{tpu_custom_call.1} parent=31 // pred_fallthru
          _
      $region32: #{tpu_custom_call.1} parent=5 // pred_fallthru
        _
      %p254 = scmp.le.s32.totalorder 1, %s23
      %p255 = scmp.lt.s32.totalorder %s23, 3
      %p256 = pnand %p254, %p255
      %p257 = pneg %p256
      // Predicated region
      $region37: #{tpu_custom_call.1} parent=5 // pred_check
        _
      $region38: #{tpu_custom_call.1} parent=5 // pred_check_branch
        %259 = sbr.rel (%p256) target = $region40
      $region39: #{tpu_custom_call.1} parent=5 // pred_region
        %s260 = ssub.s32 %s23, 1
        %s261 = sand.u32 %s36, 1
        %s262 = scalar_lea.sflag [#allocation5], %s261
        %s263 = sand.u32 %s36, 1
        %s264 = smul.addr %s263, 8
        %s265 = scalar_lea.vmem [#allocation4], %s264
        // Predicated region
        $region41: #{tpu_custom_call.1} parent=39 // pred_check
          %p266 = pneg %p49
        $region42: #{tpu_custom_call.1} parent=39 // pred_check_branch
          %268 = sbr.rel (%p266) target = $region44
        $region43: #{tpu_custom_call.1} parent=39 // pred_region
          %269 = dma.done %s262, 128
        $region44: #{tpu_custom_call.1} parent=39 // pred_fallthru
          _
        // Predicated region
        $region45: #{tpu_custom_call.1} parent=39 // pred_check
          %p270 = pneg %p70
        $region46: #{tpu_custom_call.1} parent=39 // pred_check_branch
          %272 = sbr.rel (%p270) target = $region48
        $region47: #{tpu_custom_call.1} parent=39 // pred_region
          %273 = dma.done [#allocation8], 256
        $region48: #{tpu_custom_call.1} parent=39 // pred_fallthru
          _
        // Predicated region
        $region49: #{tpu_custom_call.1} parent=39 // pred_check
          %p274 = pneg %p112
        $region50: #{tpu_custom_call.1} parent=39 // pred_check_branch
          %276 = sbr.rel (%p274) target = $region52
        $region51: #{tpu_custom_call.1} parent=39 // pred_region
          %277 = dma.done [#allocation8], 256
        $region52: #{tpu_custom_call.1} parent=39 // pred_fallthru
          _
        %s278 = sand.u32 %s36, 1
        %s279 = scalar_lea.sflag [#allocation5], %s278
        %s280 = sand.u32 %s36, 1
        %s281 = smul.addr %s280, 8
        %s282 = scalar_lea.vmem [#allocation4], %s281
        %p283 = pneg %p49
        %p284 = pneg %p46
        %p285 = pneg %p70
        %p286 = pneg %p67
        %p287 = pneg %p91
        %p288 = pneg %p88
        %p289 = pneg %p112
        %p290 = pneg %p109
        %p291 = pneg %p133
        %p292 = pneg %p130
        %p293 = pneg %p159
        %p294 = pneg %p156
        %s295 = sand.u32 %s146, 1
        %s296 = scalar_lea.sflag [#allocation6], %s295
        %s297 = sand.u32 %s146, 1
        %s298 = smul.addr %s297, 8
        %s299 = scalar_lea.vmem [#allocation10], %s298
        %p300 = pneg %p185
        %p301 = pneg %p182
        %s302 = sand.u32 %s172, 1
        %s303 = scalar_lea.sflag [#allocation12], %s302
        %s304 = sand.u32 %s172, 1
        %s305 = smul.addr %s304, 8
        %s306 = scalar_lea.vmem [#allocation11], %s305
        %v308 = vld [vmem:[#allocation7] sm:$0xf]
        %v309 = vld [vmem:[#allocation7 + $0x4] sm:$0xf]
        %v310 = vld [vmem:[#allocation7 + $0x8] sm:$0xf]
        %v311 = vld [vmem:[#allocation7 + $0xc] sm:$0xf]
        %v312 = vld [vmem:[#allocation9] sm:$0xf]
        %v313 = vld [vmem:[#allocation9 + $0x4] sm:$0xf]
        %v314 = vld [vmem:[#allocation9 + $0x8] sm:$0xf]
        %v315 = vld [vmem:[#allocation9 + $0xc] sm:$0xf]
        %v316 = vld [vmem:[%s2] sm:$0x1]
        %v317 = vld [vmem:[%s4] sm:$0x1]
        %v318 = vld [vmem:[%s265] sm:$0xff]
        %v319 = vpack.c.bf16 %v318, %v318
        %v321 = vlaneseq
        %v322 = vshrl.u32 %v321, 7
        %v323 = vsub.s32 0, %v322
        %v324 = vrot.slane %v316, %v323
        %v330 = vunpack.c.l.b16 %v308
        %v331 = vunpack.c.l.b16 %v309
        %v332 = vunpack.c.l.b16 %v310
        %v333 = vunpack.c.l.b16 %v311
        %v334 = vpack.c.b16 %v331, %v330
        %v335 = vpack.c.b16 %v333, %v332
        %vm338 = vcmask 261120
        %v340 = vsel %vm338, %v319, 0
        %342 = vmatprep.subr.bf16.mxu0 0
        %343 = vmatpush1.bf16.msra.mxu0 %v334
        %344 = vmatprep.subr.bf16.mxu0 0
        %345 = vmatpush1.bf16.msra.mxu0 %v335
        %346 = vmatprep.subr.bf16.mxu0 0
        %347 = vmatpush1.bf16.msra.mxu0 0
        %348 = vmatprep.subr.bf16.mxu0 0
        %349 = vmatpush1.bf16.msra.mxu0 0
        %350 = vmatprep.subr.bf16.mxu0 0
        %351 = vmatpush1.bf16.msra.mxu0 0
        %352 = vmatprep.subr.bf16.mxu0 0
        %353 = vmatpush1.bf16.msra.mxu0 0
        %354 = vmatprep.subr.bf16.mxu0 0
        %355 = vmatpush1.bf16.msra.mxu0 0
        %356 = vmatprep.subr.bf16.mxu0 0
        %357 = vmatpush1.bf16.msra.mxu0 0
        %358 = vmatprep.subr.bf16.mxu0 0
        %359 = vmatpush1.bf16.msra.mxu0 0
        %360 = vmatprep.subr.bf16.mxu0 0
        %361 = vmatpush1.bf16.msra.mxu0 0
        %362 = vmatprep.subr.bf16.mxu0 0
        %363 = vmatpush1.bf16.msra.mxu0 0
        %364 = vmatprep.subr.bf16.mxu0 0
        %365 = vmatpush1.bf16.msra.mxu0 0
        %366 = vmatprep.subr.bf16.mxu0 0
        %367 = vmatpush1.bf16.msra.mxu0 0
        %368 = vmatprep.subr.bf16.mxu0 0
        %369 = vmatpush1.bf16.msra.mxu0 0
        %370 = vmatprep.subr.bf16.mxu0 0
        %371 = vmatpush1.bf16.msra.mxu0 0
        %372 = vmatprep.subr.bf16.mxu0 0
        %373 = vmatpush1.bf16.msra.mxu0 0
        %374 = vmatprep.mubr.bf16.mxu0 0
        %375 = vmatmul.mubr.bf16.gmra.mrb[0].mxu0 %v340
        %v376 = vpop.f32.mrb[0].mxu0
        %v377 = vadd.f32 %v324, %v376
        %v378 = vpop.f32.mrb[0].mxu0
        %v379 = vpop.f32.mrb[0].mxu0
        %v380 = vpop.f32.mrb[0].mxu0
        %381 = vdwg.mxu0
        %vm382 = vcmask 64512
        %383 = vst.msk [vmem:[#allocation3] sm:$0xff] %vm382, 0.0
        %v384 = vpack.c.bf16 %v377, %v377
        %386 = vrot.lane.b32.xlu0 %v384, 96
        %v387 = vpop.permute.xlu0 %386
        %v389 = vsel %vm382, %v384, 0
        %v392 = vsel %vm382, %v387, 0
        %394 = vmatprep.subr.bf16.mxu0 0
        %395 = vmatpush1.bf16.xpose.msra.mxu0 %v392
        %396 = vmatprep.subr.bf16.mxu0 0
        %397 = vmatpush1.bf16.xpose.msra.mxu0 0
        %398 = vmatprep.subr.bf16.mxu0 0
        %399 = vmatpush1.bf16.xpose.msra.mxu0 0
        %400 = vmatprep.subr.bf16.mxu0 0
        %401 = vmatpush1.bf16.xpose.msra.mxu0 0
        %402 = vmatprep.subr.bf16.mxu0 0
        %403 = vmatpush1.bf16.xpose.msra.mxu0 0
        %404 = vmatprep.subr.bf16.mxu0 0
        %405 = vmatpush1.bf16.xpose.msra.mxu0 0
        %406 = vmatprep.subr.bf16.mxu0 0
        %407 = vmatpush1.bf16.xpose.msra.mxu0 0
        %408 = vmatprep.subr.bf16.mxu0 0
        %409 = vmatpush1.bf16.xpose.msra.mxu0 0
        %410 = vmatprep.subr.bf16.mxu0 0
        %411 = vmatpush1.bf16.xpose.msra.mxu0 0
        %412 = vmatprep.subr.bf16.mxu0 0
        %413 = vmatpush1.bf16.xpose.msra.mxu0 0
        %414 = vmatprep.subr.bf16.mxu0 0
        %415 = vmatpush1.bf16.xpose.msra.mxu0 0
        %416 = vmatprep.subr.bf16.mxu0 0
        %417 = vmatpush1.bf16.xpose.msra.mxu0 0
        %418 = vmatprep.subr.bf16.mxu0 0
        %419 = vmatpush1.bf16.xpose.msra.mxu0 0
        %420 = vmatprep.subr.bf16.mxu0 0
        %421 = vmatpush1.bf16.xpose.msra.mxu0 0
        %422 = vmatprep.subr.bf16.mxu0 0
        %423 = vmatpush1.bf16.xpose.msra.mxu0 0
        %424 = vmatprep.subr.bf16.mxu0 0
        %425 = vmatpush1.bf16.xpose.msra.mxu0 0
        %426 = vmatprep.mubr.bf16.mxu0 0
        %427 = vmatmul.mubr.bf16.gmra.mrb[0].mxu0 %v389
        %v428 = vpop.f32.mrb[0].mxu0
        %v429 = vadd.f32 0.0, %v428
        %v430 = vpop.f32.mrb[0].mxu0
        %v431 = vpop.f32.mrb[0].mxu0
        %v432 = vpop.f32.mrb[0].mxu0
        %433 = vdwg.mxu0
        %v434 = vsel %vm382, %v429, -inf
        %435 = vmax.xlane.f32.xlu0 %v434
        %v436 = vpop.xlane.xlu0 %435
        %v437 = vsub.f32 %v429, %v436
        %v438 = vmul.f32 %v437, 1.442695
        %v439 = vpow.pop %v438
        %v440 = vsel %vm382, %v439, 0.0
        %441 = vadd.xlane.f32.xlu0 %v440
        %v442 = vpop.xlane.xlu0 %441
        %v443 = vrcp.pop %v442
        %v444 = vmul.f32 %v439, %v443
        %v445 = vld [vmem:[#allocation3] sm:$0xff]
        %v446 = vadd.f32 %v445, %v444
        %447 = vst.msk [vmem:[#allocation3] sm:$0xff] %vm382, %v446
        %v448 = vpack.c.bf16 %v444, %v444
        %449 = vrot.lane.b32.xlu0 %v384, 64
        %v450 = vpop.permute.xlu0 %449
        %v452 = vsel %vm382, %v448, 0
        %vm454 = vcmask 1043456
        %v456 = vsel %vm454, %v450, 0
        %458 = vmatprep.subr.bf16.mxu0 0
        %459 = vmatpush1.bf16.msra.mxu0 %v456
        %460 = vmatprep.subr.bf16.mxu0 0
        %461 = vmatpush1.bf16.msra.mxu0 0
        %462 = vmatprep.subr.bf16.mxu0 0
        %463 = vmatpush1.bf16.msra.mxu0 0
        %464 = vmatprep.subr.bf16.mxu0 0
        %465 = vmatpush1.bf16.msra.mxu0 0
        %466 = vmatprep.subr.bf16.mxu0 0
        %467 = vmatpush1.bf16.msra.mxu0 0
        %468 = vmatprep.subr.bf16.mxu0 0
        %469 = vmatpush1.bf16.msra.mxu0 0
        %470 = vmatprep.subr.bf16.mxu0 0
        %471 = vmatpush1.bf16.msra.mxu0 0
        %472 = vmatprep.subr.bf16.mxu0 0
        %473 = vmatpush1.bf16.msra.mxu0 0
        %474 = vmatprep.subr.bf16.mxu0 0
        %475 = vmatpush1.bf16.msra.mxu0 0
        %476 = vmatprep.subr.bf16.mxu0 0
        %477 = vmatpush1.bf16.msra.mxu0 0
        %478 = vmatprep.subr.bf16.mxu0 0
        %479 = vmatpush1.bf16.msra.mxu0 0
        %480 = vmatprep.subr.bf16.mxu0 0
        %481 = vmatpush1.bf16.msra.mxu0 0
        %482 = vmatprep.subr.bf16.mxu0 0
        %483 = vmatpush1.bf16.msra.mxu0 0
        %484 = vmatprep.subr.bf16.mxu0 0
        %485 = vmatpush1.bf16.msra.mxu0 0
        %486 = vmatprep.subr.bf16.mxu0 0
        %487 = vmatpush1.bf16.msra.mxu0 0
        %488 = vmatprep.subr.bf16.mxu0 0
        %489 = vmatpush1.bf16.msra.mxu0 0
        %490 = vmatprep.mubr.bf16.mxu0 0
        %491 = vmatmul.mubr.bf16.gmra.mrb[0].mxu0 %v452
        %v492 = vpop.f32.mrb[0].mxu0
        %v493 = vadd.f32 0.0, %v492
        %v494 = vpop.f32.mrb[0].mxu0
        %v495 = vpop.f32.mrb[0].mxu0
        %v496 = vpop.f32.mrb[0].mxu0
        %497 = vdwg.mxu0
        %498 = vst.msk [vmem:[#allocation2] sm:$0xff] %vm382, %v493
        %499 = vrot.lane.b32.xlu0 %v384, 120
        %v500 = vpop.permute.xlu0 %499
        %501 = vrot.lane.b32.xlu0 %v384, 88
        %v502 = vpop.permute.xlu0 %501
        %v504 = vsel %vm382, %v500, 0
        %v507 = vsel %vm382, %v502, 0
        %509 = vmatprep.subr.bf16.mxu0 0
        %510 = vmatpush1.bf16.xpose.msra.mxu0 %v507
        %511 = vmatprep.subr.bf16.mxu0 0
        %512 = vmatpush1.bf16.xpose.msra.mxu0 0
        %513 = vmatprep.subr.bf16.mxu0 0
        %514 = vmatpush1.bf16.xpose.msra.mxu0 0
        %515 = vmatprep.subr.bf16.mxu0 0
        %516 = vmatpush1.bf16.xpose.msra.mxu0 0
        %517 = vmatprep.subr.bf16.mxu0 0
        %518 = vmatpush1.bf16.xpose.msra.mxu0 0
        %519 = vmatprep.subr.bf16.mxu0 0
        %520 = vmatpush1.bf16.xpose.msra.mxu0 0
        %521 = vmatprep.subr.bf16.mxu0 0
        %522 = vmatpush1.bf16.xpose.msra.mxu0 0
        %523 = vmatprep.subr.bf16.mxu0 0
        %524 = vmatpush1.bf16.xpose.msra.mxu0 0
        %525 = vmatprep.subr.bf16.mxu0 0
        %526 = vmatpush1.bf16.xpose.msra.mxu0 0
        %527 = vmatprep.subr.bf16.mxu0 0
        %528 = vmatpush1.bf16.xpose.msra.mxu0 0
        %529 = vmatprep.subr.bf16.mxu0 0
        %530 = vmatpush1.bf16.xpose.msra.mxu0 0
        %531 = vmatprep.subr.bf16.mxu0 0
        %532 = vmatpush1.bf16.xpose.msra.mxu0 0
        %533 = vmatprep.subr.bf16.mxu0 0
        %534 = vmatpush1.bf16.xpose.msra.mxu0 0
        %535 = vmatprep.subr.bf16.mxu0 0
        %536 = vmatpush1.bf16.xpose.msra.mxu0 0
        %537 = vmatprep.subr.bf16.mxu0 0
        %538 = vmatpush1.bf16.xpose.msra.mxu0 0
        %539 = vmatprep.subr.bf16.mxu0 0
        %540 = vmatpush1.bf16.xpose.msra.mxu0 0
        %541 = vmatprep.mubr.bf16.mxu0 0
        %542 = vmatmul.mubr.bf16.gmra.mrb[0].mxu0 %v504
        %v543 = vpop.f32.mrb[0].mxu0
        %v544 = vadd.f32 0.0, %v543
        %v545 = vpop.f32.mrb[0].mxu0
        %v546 = vpop.f32.mrb[0].mxu0
        %v547 = vpop.f32.mrb[0].mxu0
        %548 = vdwg.mxu0
        %v549 = vsel %vm382, %v544, -inf
        %550 = vmax.xlane.f32.xlu0 %v549
        %v551 = vpop.xlane.xlu0 %550
        %v552 = vsub.f32 %v544, %v551
        %v553 = vmul.f32 %v552, 1.442695
        %v554 = vpow.pop %v553
        %v555 = vsel %vm382, %v554, 0.0
        %556 = vadd.xlane.f32.xlu0 %v555
        %v557 = vpop.xlane.xlu0 %556
        %v558 = vrcp.pop %v557
        %v559 = vmul.f32 %v554, %v558
        %v560 = vld [vmem:[#allocation3] sm:$0xff]
        %v561 = vadd.f32 %v560, %v559
        %562 = vst.msk [vmem:[#allocation3] sm:$0xff] %vm382, %v561
        %v563 = vpack.c.bf16 %v559, %v559
        %564 = vrot.lane.b32.xlu0 %v384, 56
        %v565 = vpop.permute.xlu0 %564
        %v567 = vsel %vm382, %v563, 0
        %v570 = vsel %vm454, %v565, 0
        %572 = vmatprep.subr.bf16.mxu0 0
        %573 = vmatpush1.bf16.msra.mxu0 %v570
        %574 = vmatprep.subr.bf16.mxu0 0
        %575 = vmatpush1.bf16.msra.mxu0 0
        %576 = vmatprep.subr.bf16.mxu0 0
        %577 = vmatpush1.bf16.msra.mxu0 0
        %578 = vmatprep.subr.bf16.mxu0 0
        %579 = vmatpush1.bf16.msra.mxu0 0
        %580 = vmatprep.subr.bf16.mxu0 0
        %581 = vmatpush1.bf16.msra.mxu0 0
        %582 = vmatprep.subr.bf16.mxu0 0
        %583 = vmatpush1.bf16.msra.mxu0 0
        %584 = vmatprep.subr.bf16.mxu0 0
        %585 = vmatpush1.bf16.msra.mxu0 0
        %586 = vmatprep.subr.bf16.mxu0 0
        %587 = vmatpush1.bf16.msra.mxu0 0
        %588 = vmatprep.subr.bf16.mxu0 0
        %589 = vmatpush1.bf16.msra.mxu0 0
        %590 = vmatprep.subr.bf16.mxu0 0
        %591 = vmatpush1.bf16.msra.mxu0 0
        %592 = vmatprep.subr.bf16.mxu0 0
        %593 = vmatpush1.bf16.msra.mxu0 0
        %594 = vmatprep.subr.bf16.mxu0 0
        %595 = vmatpush1.bf16.msra.mxu0 0
        %596 = vmatprep.subr.bf16.mxu0 0
        %597 = vmatpush1.bf16.msra.mxu0 0
        %598 = vmatprep.subr.bf16.mxu0 0
        %599 = vmatpush1.bf16.msra.mxu0 0
        %600 = vmatprep.subr.bf16.mxu0 0
        %601 = vmatpush1.bf16.msra.mxu0 0
        %602 = vmatprep.subr.bf16.mxu0 0
        %603 = vmatpush1.bf16.msra.mxu0 0
        %604 = vmatprep.mubr.bf16.mxu0 0
        %605 = vmatmul.mubr.bf16.gmra.mrb[0].mxu0 %v567
        %v606 = vpop.f32.mrb[0].mxu0
        %v607 = vadd.f32 0.0, %v606
        %v608 = vpop.f32.mrb[0].mxu0
        %v609 = vpop.f32.mrb[0].mxu0
        %v610 = vpop.f32.mrb[0].mxu0
        %611 = vdwg.mxu0
        %613 = vrot.lane.b32.xlu0 %v607, 8
        %v614 = vpop.permute.xlu0 %613
        %vm616 = vcmask 130112
        %617 = vst.msk [vmem:[#allocation2] sm:$0xff] %vm616, %v614
        %618 = vrot.lane.b32.xlu0 %v384, 112
        %v619 = vpop.permute.xlu0 %618
        %620 = vrot.lane.b32.xlu0 %v384, 80
        %v621 = vpop.permute.xlu0 %620
        %v623 = vsel %vm382, %v619, 0
        %v626 = vsel %vm382, %v621, 0
        %628 = vmatprep.subr.bf16.mxu0 0
        %629 = vmatpush1.bf16.xpose.msra.mxu0 %v626
        %630 = vmatprep.subr.bf16.mxu0 0
        %631 = vmatpush1.bf16.xpose.msra.mxu0 0
        %632 = vmatprep.subr.bf16.mxu0 0
        %633 = vmatpush1.bf16.xpose.msra.mxu0 0
        %634 = vmatprep.subr.bf16.mxu0 0
        %635 = vmatpush1.bf16.xpose.msra.mxu0 0
        %636 = vmatprep.subr.bf16.mxu0 0
        %637 = vmatpush1.bf16.xpose.msra.mxu0 0
        %638 = vmatprep.subr.bf16.mxu0 0
        %639 = vmatpush1.bf16.xpose.msra.mxu0 0
        %640 = vmatprep.subr.bf16.mxu0 0
        %641 = vmatpush1.bf16.xpose.msra.mxu0 0
        %642 = vmatprep.subr.bf16.mxu0 0
        %643 = vmatpush1.bf16.xpose.msra.mxu0 0
        %644 = vmatprep.subr.bf16.mxu0 0
        %645 = vmatpush1.bf16.xpose.msra.mxu0 0
        %646 = vmatprep.subr.bf16.mxu0 0
        %647 = vmatpush1.bf16.xpose.msra.mxu0 0
        %648 = vmatprep.subr.bf16.mxu0 0
        %649 = vmatpush1.bf16.xpose.msra.mxu0 0
        %650 = vmatprep.subr.bf16.mxu0 0
        %651 = vmatpush1.bf16.xpose.msra.mxu0 0
        %652 = vmatprep.subr.bf16.mxu0 0
        %653 = vmatpush1.bf16.xpose.msra.mxu0 0
        %654 = vmatprep.subr.bf16.mxu0 0
        %655 = vmatpush1.bf16.xpose.msra.mxu0 0
        %656 = vmatprep.subr.bf16.mxu0 0
        %657 = vmatpush1.bf16.xpose.msra.mxu0 0
        %658 = vmatprep.subr.bf16.mxu0 0
        %659 = vmatpush1.bf16.xpose.msra.mxu0 0
        %660 = vmatprep.mubr.bf16.mxu0 0
        %661 = vmatmul.mubr.bf16.gmra.mrb[0].mxu0 %v623
        %v662 = vpop.f32.mrb[0].mxu0
        %v663 = vadd.f32 0.0, %v662
        %v664 = vpop.f32.mrb[0].mxu0
        %v665 = vpop.f32.mrb[0].mxu0
        %v666 = vpop.f32.mrb[0].mxu0
        %667 = vdwg.mxu0
        %v668 = vsel %vm382, %v663, -inf
        %669 = vmax.xlane.f32.xlu0 %v668
        %v670 = vpop.xlane.xlu0 %669
        %v671 = vsub.f32 %v663, %v670
        %v672 = vmul.f32 %v671, 1.442695
        %v673 = vpow.pop %v672
        %v674 = vsel %vm382, %v673, 0.0
        %675 = vadd.xlane.f32.xlu0 %v674
        %v676 = vpop.xlane.xlu0 %675
        %v677 = vrcp.pop %v676
        %v678 = vmul.f32 %v673, %v677
        %v679 = vld [vmem:[#allocation3] sm:$0xff]
        %v680 = vadd.f32 %v679, %v678
        %681 = vst.msk [vmem:[#allocation3] sm:$0xff] %vm382, %v680
        %v682 = vpack.c.bf16 %v678, %v678
        %683 = vrot.lane.b32.xlu0 %v384, 48
        %v684 = vpop.permute.xlu0 %683
        %v686 = vsel %vm382, %v682, 0
        %v689 = vsel %vm454, %v684, 0
        %691 = vmatprep.subr.bf16.mxu0 0
        %692 = vmatpush1.bf16.msra.mxu0 %v689
        %693 = vmatprep.subr.bf16.mxu0 0
        %694 = vmatpush1.bf16.msra.mxu0 0
        %695 = vmatprep.subr.bf16.mxu0 0
        %696 = vmatpush1.bf16.msra.mxu0 0
        %697 = vmatprep.subr.bf16.mxu0 0
        %698 = vmatpush1.bf16.msra.mxu0 0
        %699 = vmatprep.subr.bf16.mxu0 0
        %700 = vmatpush1.bf16.msra.mxu0 0
        %701 = vmatprep.subr.bf16.mxu0 0
        %702 = vmatpush1.bf16.msra.mxu0 0
        %703 = vmatprep.subr.bf16.mxu0 0
        %704 = vmatpush1.bf16.msra.mxu0 0
        %705 = vmatprep.subr.bf16.mxu0 0
        %706 = vmatpush1.bf16.msra.mxu0 0
        %707 = vmatprep.subr.bf16.mxu0 0
        %708 = vmatpush1.bf16.msra.mxu0 0
        %709 = vmatprep.subr.bf16.mxu0 0
        %710 = vmatpush1.bf16.msra.mxu0 0
        %711 = vmatprep.subr.bf16.mxu0 0
        %712 = vmatpush1.bf16.msra.mxu0 0
        %713 = vmatprep.subr.bf16.mxu0 0
        %714 = vmatpush1.bf16.msra.mxu0 0
        %715 = vmatprep.subr.bf16.mxu0 0
        %716 = vmatpush1.bf16.msra.mxu0 0
        %717 = vmatprep.subr.bf16.mxu0 0
        %718 = vmatpush1.bf16.msra.mxu0 0
        %719 = vmatprep.subr.bf16.mxu0 0
        %720 = vmatpush1.bf16.msra.mxu0 0
        %721 = vmatprep.subr.bf16.mxu0 0
        %722 = vmatpush1.bf16.msra.mxu0 0
        %723 = vmatprep.mubr.bf16.mxu0 0
        %724 = vmatmul.mubr.bf16.gmra.mrb[0].mxu0 %v686
        %v725 = vpop.f32.mrb[0].mxu0
        %v726 = vadd.f32 0.0, %v725
        %v727 = vpop.f32.mrb[0].mxu0
        %v728 = vpop.f32.mrb[0].mxu0
        %v729 = vpop.f32.mrb[0].mxu0
        %730 = vdwg.mxu0
        %732 = vrot.lane.b32.xlu0 %v726, 16
        %v733 = vpop.permute.xlu0 %732
        %vm735 = vcmask 195712
        %736 = vst.msk [vmem:[#allocation2] sm:$0xff] %vm735, %v733
        %737 = vrot.lane.b32.xlu0 %v384, 104
        %v738 = vpop.permute.xlu0 %737
        %739 = vrot.lane.b32.xlu0 %v384, 72
        %v740 = vpop.permute.xlu0 %739
        %v742 = vsel %vm382, %v738, 0
        %v745 = vsel %vm382, %v740, 0
        %747 = vmatprep.subr.bf16.mxu0 0
        %748 = vmatpush1.bf16.xpose.msra.mxu0 %v745
        %749 = vmatprep.subr.bf16.mxu0 0
        %750 = vmatpush1.bf16.xpose.msra.mxu0 0
        %751 = vmatprep.subr.bf16.mxu0 0
        %752 = vmatpush1.bf16.xpose.msra.mxu0 0
        %753 = vmatprep.subr.bf16.mxu0 0
        %754 = vmatpush1.bf16.xpose.msra.mxu0 0
        %755 = vmatprep.subr.bf16.mxu0 0
        %756 = vmatpush1.bf16.xpose.msra.mxu0 0
        %757 = vmatprep.subr.bf16.mxu0 0
        %758 = vmatpush1.bf16.xpose.msra.mxu0 0
        %759 = vmatprep.subr.bf16.mxu0 0
        %760 = vmatpush1.bf16.xpose.msra.mxu0 0
        %761 = vmatprep.subr.bf16.mxu0 0
        %762 = vmatpush1.bf16.xpose.msra.mxu0 0
        %763 = vmatprep.subr.bf16.mxu0 0
        %764 = vmatpush1.bf16.xpose.msra.mxu0 0
        %765 = vmatprep.subr.bf16.mxu0 0
        %766 = vmatpush1.bf16.xpose.msra.mxu0 0
        %767 = vmatprep.subr.bf16.mxu0 0
        %768 = vmatpush1.bf16.xpose.msra.mxu0 0
        %769 = vmatprep.subr.bf16.mxu0 0
        %770 = vmatpush1.bf16.xpose.msra.mxu0 0
        %771 = vmatprep.subr.bf16.mxu0 0
        %772 = vmatpush1.bf16.xpose.msra.mxu0 0
        %773 = vmatprep.subr.bf16.mxu0 0
        %774 = vmatpush1.bf16.xpose.msra.mxu0 0
        %775 = vmatprep.subr.bf16.mxu0 0
        %776 = vmatpush1.bf16.xpose.msra.mxu0 0
        %777 = vmatprep.subr.bf16.mxu0 0
        %778 = vmatpush1.bf16.xpose.msra.mxu0 0
        %779 = vmatprep.mubr.bf16.mxu0 0
        %780 = vmatmul.mubr.bf16.gmra.mrb[0].mxu0 %v742
        %v781 = vpop.f32.mrb[0].mxu0
        %v782 = vadd.f32 0.0, %v781
        %v783 = vpop.f32.mrb[0].mxu0
        %v784 = vpop.f32.mrb[0].mxu0
        %v785 = vpop.f32.mrb[0].mxu0
        %786 = vdwg.mxu0
        %v787 = vsel %vm382, %v782, -inf
        %788 = vmax.xlane.f32.xlu0 %v787
        %v789 = vpop.xlane.xlu0 %788
        %v790 = vsub.f32 %v782, %v789
        %v791 = vmul.f32 %v790, 1.442695
        %v792 = vpow.pop %v791
        %v793 = vsel %vm382, %v792, 0.0
        %794 = vadd.xlane.f32.xlu0 %v793
        %v795 = vpop.xlane.xlu0 %794
        %v796 = vrcp.pop %v795
        %v797 = vmul.f32 %v792, %v796
        %v798 = vld [vmem:[#allocation3] sm:$0xff]
        %v799 = vadd.f32 %v798, %v797
        %800 = vst.msk [vmem:[#allocation3] sm:$0xff] %vm382, %v799
        %v801 = vpack.c.bf16 %v797, %v797
        %802 = vrot.lane.b32.xlu0 %v384, 40
        %v803 = vpop.permute.xlu0 %802
        %v805 = vsel %vm382, %v801, 0
        %v808 = vsel %vm454, %v803, 0
        %810 = vmatprep.subr.bf16.mxu0 0
        %811 = vmatpush1.bf16.msra.mxu0 %v808
        %812 = vmatprep.subr.bf16.mxu0 0
        %813 = vmatpush1.bf16.msra.mxu0 0
        %814 = vmatprep.subr.bf16.mxu0 0
        %815 = vmatpush1.bf16.msra.mxu0 0
        %816 = vmatprep.subr.bf16.mxu0 0
        %817 = vmatpush1.bf16.msra.mxu0 0
        %818 = vmatprep.subr.bf16.mxu0 0
        %819 = vmatpush1.bf16.msra.mxu0 0
        %820 = vmatprep.subr.bf16.mxu0 0
        %821 = vmatpush1.bf16.msra.mxu0 0
        %822 = vmatprep.subr.bf16.mxu0 0
        %823 = vmatpush1.bf16.msra.mxu0 0
        %824 = vmatprep.subr.bf16.mxu0 0
        %825 = vmatpush1.bf16.msra.mxu0 0
        %826 = vmatprep.subr.bf16.mxu0 0
        %827 = vmatpush1.bf16.msra.mxu0 0
        %828 = vmatprep.subr.bf16.mxu0 0
        %829 = vmatpush1.bf16.msra.mxu0 0
        %830 = vmatprep.subr.bf16.mxu0 0
        %831 = vmatpush1.bf16.msra.mxu0 0
        %832 = vmatprep.subr.bf16.mxu0 0
        %833 = vmatpush1.bf16.msra.mxu0 0
        %834 = vmatprep.subr.bf16.mxu0 0
        %835 = vmatpush1.bf16.msra.mxu0 0
        %836 = vmatprep.subr.bf16.mxu0 0
        %837 = vmatpush1.bf16.msra.mxu0 0
        %838 = vmatprep.subr.bf16.mxu0 0
        %839 = vmatpush1.bf16.msra.mxu0 0
        %840 = vmatprep.subr.bf16.mxu0 0
        %841 = vmatpush1.bf16.msra.mxu0 0
        %842 = vmatprep.mubr.bf16.mxu0 0
        %843 = vmatmul.mubr.bf16.gmra.mrb[0].mxu0 %v805
        %v844 = vpop.f32.mrb[0].mxu0
        %v845 = vadd.f32 0.0, %v844
        %v846 = vpop.f32.mrb[0].mxu0
        %v847 = vpop.f32.mrb[0].mxu0
        %v848 = vpop.f32.mrb[0].mxu0
        %849 = vdwg.mxu0
        %851 = vrot.lane.b32.xlu0 %v845, 24
        %v852 = vpop.permute.xlu0 %851
        %vm854 = vcmask 261312
        %855 = vst.msk [vmem:[#allocation2] sm:$0xff] %vm854, %v852
        %v856 = vld [vmem:[#allocation2] sm:$0xff]
        %v857 = vpack.c.bf16 %v856, %v856
        %v859 = vlaneseq
        %v860 = vshrl.u32 %v859, 7
        %v861 = vsub.s32 0, %v860
        %v862 = vrot.slane %v317, %v861
        %v868 = vunpack.c.l.b16 %v312
        %v869 = vunpack.c.l.b16 %v313
        %v870 = vunpack.c.l.b16 %v314
        %v871 = vunpack.c.l.b16 %v315
        %v872 = vpack.c.b16 %v869, %v868
        %v873 = vpack.c.b16 %v871, %v870
        %v877 = vsel %vm338, %v857, 0
        %879 = vmatprep.subr.bf16.mxu0 0
        %880 = vmatpush1.bf16.msra.mxu0 %v872
        %881 = vmatprep.subr.bf16.mxu0 0
        %882 = vmatpush1.bf16.msra.mxu0 %v873
        %883 = vmatprep.subr.bf16.mxu0 0
        %884 = vmatpush1.bf16.msra.mxu0 0
        %885 = vmatprep.subr.bf16.mxu0 0
        %886 = vmatpush1.bf16.msra.mxu0 0
        %887 = vmatprep.subr.bf16.mxu0 0
        %888 = vmatpush1.bf16.msra.mxu0 0
        %889 = vmatprep.subr.bf16.mxu0 0
        %890 = vmatpush1.bf16.msra.mxu0 0
        %891 = vmatprep.subr.bf16.mxu0 0
        %892 = vmatpush1.bf16.msra.mxu0 0
        %893 = vmatprep.subr.bf16.mxu0 0
        %894 = vmatpush1.bf16.msra.mxu0 0
        %895 = vmatprep.subr.bf16.mxu0 0
        %896 = vmatpush1.bf16.msra.mxu0 0
        %897 = vmatprep.subr.bf16.mxu0 0
        %898 = vmatpush1.bf16.msra.mxu0 0
        %899 = vmatprep.subr.bf16.mxu0 0
        %900 = vmatpush1.bf16.msra.mxu0 0
        %901 = vmatprep.subr.bf16.mxu0 0
        %902 = vmatpush1.bf16.msra.mxu0 0
        %903 = vmatprep.subr.bf16.mxu0 0
        %904 = vmatpush1.bf16.msra.mxu0 0
        %905 = vmatprep.subr.bf16.mxu0 0
        %906 = vmatpush1.bf16.msra.mxu0 0
        %907 = vmatprep.subr.bf16.mxu0 0
        %908 = vmatpush1.bf16.msra.mxu0 0
        %909 = vmatprep.subr.bf16.mxu0 0
        %910 = vmatpush1.bf16.msra.mxu0 0
        %911 = vmatprep.mubr.bf16.mxu0 0
        %912 = vmatmul.mubr.bf16.gmra.mrb[0].mxu0 %v877
        %v913 = vpop.f32.mrb[0].mxu0
        %v914 = vadd.f32 %v862, %v913
        %v915 = vpop.f32.mrb[0].mxu0
        %v916 = vpop.f32.mrb[0].mxu0
        %v917 = vpop.f32.mrb[0].mxu0
        %918 = vdwg.mxu0
        %919 = vst.msk [vmem:[%s299] sm:$0xff] %vm338, %v914
        %v920 = vld [vmem:[#allocation3] sm:$0xff]
        %v921 = vmul.f32 %v920, 0.25
        %922 = vst.msk [vmem:[%s306] sm:$0xff] %vm382, %v921
        %s923 = sand.u32 %s146, 1
        %s924 = scalar_lea.sflag [#allocation6], %s923
        %s925 = sand.u32 %s146, 1
        %s926 = smul.addr %s925, 8
        %s927 = scalar_lea.vmem [#allocation10], %s926
        %s928 = sand.u32 %s172, 1
        %s929 = scalar_lea.sflag [#allocation12], %s928
        %s930 = sand.u32 %s172, 1
        %s931 = smul.addr %s930, 8
        %s932 = scalar_lea.vmem [#allocation11], %s931
        // Predicated region
        $region53: #{tpu_custom_call.1} parent=39 // pred_check
          %p933 = pneg %p156
        $region54: #{tpu_custom_call.1} parent=39 // pred_check_branch
          %935 = sbr.rel (%p933) target = $region56
        $region55: #{tpu_custom_call.1} parent=39 // pred_region
          %s937 = ssub.s32 128, 128
          %938 = vsyncadd %s924, %s937
          %s939 = smul.addr %s28, 128
          %s940 = scalar_lea.hbm %s5, %s939
          %s942 = sshll.u32 %s927, 4
          %s943 = int_to_ptr.vmem [resolvable:$true] %s942
          %945 = dma.vmem_to_hbm [thread:$0]  %s943, 128, %s940, %s924
        $region56: #{tpu_custom_call.1} parent=39 // pred_fallthru
          _
        // Predicated region
        $region57: #{tpu_custom_call.1} parent=39 // pred_check
          %p946 = pneg %p182
        $region58: #{tpu_custom_call.1} parent=39 // pred_check_branch
          %948 = sbr.rel (%p946) target = $region60
        $region59: #{tpu_custom_call.1} parent=39 // pred_region
          %s950 = ssub.s32 128, 128
          %951 = vsyncadd %s929, %s950
          %s952 = smul.addr %s28, 128
          %s953 = scalar_lea.hbm %s6, %s952
          %s955 = sshll.u32 %s932, 4
          %s956 = int_to_ptr.vmem [resolvable:$true] %s955
          %958 = dma.vmem_to_hbm [thread:$0]  %s956, 128, %s953, %s929
        $region60: #{tpu_custom_call.1} parent=39 // pred_fallthru
          _
      $region40: #{tpu_custom_call.1} parent=5 // pred_fallthru
        _
      %p959 = scmp.le.s32.totalorder 2, %s23
      // Predicated region
      $region61: #{tpu_custom_call.1} parent=5 // pred_check
        %p960 = pneg %p959
      $region62: #{tpu_custom_call.1} parent=5 // pred_check_branch
        %962 = sbr.rel (%p960) target = $region64
      $region63: #{tpu_custom_call.1} parent=5 // pred_region
        %s963 = ssub.s32 %s23, 2
        // Predicated region
        $region65: #{tpu_custom_call.1} parent=63 // pred_check
          %p964 = pneg %p162
        $region66: #{tpu_custom_call.1} parent=63 // pred_check_branch
          %966 = sbr.rel (%p964) target = $region68
        $region67: #{tpu_custom_call.1} parent=63 // pred_region
          %s967 = sand.u32 %s147, 1
          %s968 = scalar_lea.sflag [#allocation6], %s967
          %s969 = sand.u32 %s147, 1
          %s970 = smul.addr %s969, 8
          %s971 = scalar_lea.vmem [#allocation10], %s970
          %972 = dma.done %s968, 128
        $region68: #{tpu_custom_call.1} parent=63 // pred_fallthru
          _
        // Predicated region
        $region69: #{tpu_custom_call.1} parent=63 // pred_check
          %p973 = pneg %p188
        $region70: #{tpu_custom_call.1} parent=63 // pred_check_branch
          %975 = sbr.rel (%p973) target = $region72
        $region71: #{tpu_custom_call.1} parent=63 // pred_region
          %s976 = sand.u32 %s173, 1
          %s977 = scalar_lea.sflag [#allocation12], %s976
          %s978 = sand.u32 %s173, 1
          %s979 = smul.addr %s978, 8
          %s980 = scalar_lea.vmem [#allocation11], %s979
          %981 = dma.done %s977, 128
        $region72: #{tpu_custom_call.1} parent=63 // pred_fallthru
          _
      $region64: #{tpu_custom_call.1} parent=5 // pred_fallthru
        _
    $region6: #{tpu_custom_call.1} parent=1 // loop_footer
      %s27 = sadd.s32 1, %s23
    $region7: #{tpu_custom_call.1} parent=1 // loop_footer_branch
      %22 = sbr.rel target = $region3
    $region8: #{tpu_custom_call.1} parent=1 // loop_exit
      _
    %982 = vsyncpa [#allocation5], 1
    %s983 = scalar_lea.sflag [#allocation5], 1
    %984 = vsyncpa %s983, 1
    %985 = vsyncpa [#allocation8], 1
    %986 = vsyncpa [#allocation6], 1
    %s987 = scalar_lea.sflag [#allocation6], 1
    %988 = vsyncpa %s987, 1
    %989 = vsyncpa [#allocation12], 1
    %s990 = scalar_lea.sflag [#allocation12], 1
    %991 = vsyncpa %s990, 1

// kernel: tpu_custom_call.1
$region0: #{tpu_custom_call.1}
  #allocation0 [shape = 'u32[]', space=smem, size = 0x4, offset = 0x4, fixed_abs, tag = 'smem constant byte address 0x4 - core index']
  #allocation1 [shape = 'u32[144,128]{1,0:T(1,128)}', space=vmem, size = 0x12000, scoped, tag = 'internal scratch']
  #allocation2 [shape = 'f32[8,32]{1,0:T(8,128)}', space=vmem, size = 0x1000, scoped, tag = 'scratch operand']
  #allocation3 [shape = 'f32[8,8]{1,0:T(8,128)}', space=vmem, size = 0x1000, scoped, tag = 'scratch operand']
  %s0 = inlined_call_operand.hbm [shape: f32[2,8,32], index: 0, kind: input, shape index: {}]
  %s1 = inlined_call_operand.hbm [shape: bf16[32,96], index: 1, kind: input, shape index: {}]
  %s2 = inlined_call_operand.vmem [shape: f32[1,96], index: 2, kind: input, shape index: {}]
  %s3 = inlined_call_operand.hbm [shape: bf16[32,32], index: 3, kind: input, shape index: {}]
  %s4 = inlined_call_operand.vmem [shape: f32[1,32], index: 4, kind: input, shape index: {}]
  %s5 = inlined_call_operand.hbm [shape: f32[2,8,32], index: 5, kind: output, shape index: {0}]
  %s6 = inlined_call_operand.hbm [shape: f32[2,8,8], index: 6, kind: output, shape index: {1}]
  %7 = xla_tuple %s5, %s6
  %s8 = sld [smem:[#allocation0]]
  $region73: #{tpu_custom_call.1} parent=0
    _
  %s10 = ssub.s32 1, %s8
  %s11 = scalar_select 0, %s10, %s8
  $region1: #{tpu_custom_call.1} parent=0
    #allocation4 [shape = 'u8[8192]{0}', space=vmem, size = 0x2000, scoped, tag = 'input window, operand 0']
    #allocation5 [shape = 's32[2]{0}', space=sflag, size = 0x8, scoped, tag = 'scoped memory for tpu_custom_call.1']
    #allocation6 [shape = 's32[2]{0}', space=sflag, size = 0x8, scoped, tag = 'scoped memory for tpu_custom_call.1']
    #allocation7 [shape = 'u8[8192]{0}', space=vmem, size = 0x2000, scoped, tag = 'input window, operand 1, single buffered']
    #allocation8 [shape = 's32[1]{0}', space=sflag, size = 0x4, scoped, tag = 'scoped memory for tpu_custom_call.1']
    #allocation9 [shape = 'u8[8192]{0}', space=vmem, size = 0x2000, scoped, tag = 'input window, operand 3, single buffered']
    #allocation10 [shape = 'u8[8192]{0}', space=vmem, size = 0x2000, scoped, tag = 'output window, operand 0']
    #allocation11 [shape = 'u8[8192]{0}', space=vmem, size = 0x2000, scoped, tag = 'output window, operand 1']
    #allocation12 [shape = 's32[2]{0}', space=sflag, size = 0x8, scoped, tag = 'scoped memory for tpu_custom_call.1']
    %12 = vsyncpa [#allocation5], 0
    %s13 = scalar_lea.sflag [#allocation5], 1
    %14 = vsyncpa %s13, 0
    %15 = vsyncpa [#allocation8], 0
    %16 = vsyncpa [#allocation6], 0
    %s17 = scalar_lea.sflag [#allocation6], 1
    %18 = vsyncpa %s17, 0
    %19 = vsyncpa [#allocation12], 0
    %s20 = scalar_lea.sflag [#allocation12], 1
    %21 = vsyncpa %s20, 0
    loop: start=0, step=1, limit=4
    $region2: #{tpu_custom_call.1} parent=1 // loop_pre_header
      _
    $region3: #{tpu_custom_call.1} parent=1 // loop_header
      %s23 = sphi 0, %s27
      %p24 = scmp.ge.s32.totalorder %s23, 4
      %s33 = sphi 0, %s35
      %s36 = sphi 0, %s33
      %s37 = sphi 0, %s36
      %s53 = sphi 0, %s37
      %s57 = sphi 0, %s57
      %s59 = sphi 0, %s57
      %s60 = sphi 0, %s59
      %s74 = sphi 0, %s60
      %s78 = sphi 0, %s78
      %s80 = sphi 0, %s78
      %s81 = sphi 0, %s80
      %s95 = sphi 0, %s81
      %s99 = sphi 0, %s99
      %s101 = sphi 0, %s99
      %s102 = sphi 0, %s101
      %s116 = sphi 0, %s102
      %s120 = sphi 0, %s120
      %s122 = sphi 0, %s120
      %s123 = sphi 0, %s122
      %s137 = sphi 0, %s123
      %s143 = sphi 0, %s145
      %s146 = sphi 0, %s143
      %s147 = sphi 0, %s146
      %s163 = sphi 0, %s147
      %s169 = sphi 0, %s171
      %s172 = sphi 0, %s169
      %s173 = sphi 0, %s172
      %s189 = sphi 0, %s173
    $region4: #{tpu_custom_call.1} parent=1 // loop_header_branch
      %26 = sbr.rel (%p24) target = $region8
    $region5: #{tpu_custom_call.1} parent=1 // loop_body
      %s28 = ssub.s32 %s23, 1
      %s29 = ssub.s32 %s23, 2
      %s30 = sadd.s32 %s23, 1
      %s31 = ssub.s32 %s23, %s30
      %p32 = scmp.eq.s32.totalorder %s31, 0
      %s34 = sadd.s32 %s33, 1
      %s35 = scalar_select %p32, %s33, %s34
      %p38 = pneg %p32
      %p39 = scmp.eq.s32.totalorder %s23, 1
      %p40 = por %p38, %p39
      %p41 = scmp.ne.s32.totalorder %s33, %s36
      %p42 = scmp.eq.s32.totalorder %s23, 0
      %p43 = por %p41, %p42
      %p44 = scmp.ne.s32.totalorder %s33, %s36
      %p45 = scmp.eq.s32.totalorder %s28, 1
      %p46 = por %p44, %p45
      %p47 = scmp.ne.s32.totalorder %s36, %s37
      %p48 = scmp.eq.s32.totalorder %s28, 0
      %p49 = por %p47, %p48
      %p50 = scmp.ne.s32.totalorder %s36, %s37
      %p51 = scmp.eq.s32.totalorder %s29, 1
      %p52 = por %p50, %p51
      %p54 = scmp.ne.s32.totalorder %s37, %s53
      %p55 = scmp.eq.s32.totalorder %s29, 0
      %p56 = por %p54, %p55
      %s58 = sadd.s32 %s57, 1
      %p61 = scmp.eq.s32.totalorder %s23, 1
      %p62 = scmp.ne.s32.totalorder %s57, %s59
      %p63 = scmp.eq.s32.totalorder %s23, 0
      %p64 = por %p62, %p63
      %p65 = scmp.ne.s32.totalorder %s57, %s59
      %p66 = scmp.eq.s32.totalorder %s28, 1
      %p67 = por %p65, %p66
      %p68 = scmp.ne.s32.totalorder %s59, %s60
      %p69 = scmp.eq.s32.totalorder %s28, 0
      %p70 = por %p68, %p69
      %p71 = scmp.ne.s32.totalorder %s59, %s60
      %p72 = scmp.eq.s32.totalorder %s29, 1
      %p73 = por %p71, %p72
      %p75 = scmp.ne.s32.totalorder %s60, %s74
      %p76 = scmp.eq.s32.totalorder %s29, 0
      %p77 = por %p75, %p76
      %s79 = sadd.s32 %s78, 1
      %p82 = scmp.eq.s32.totalorder %s23, 1
      %p83 = scmp.ne.s32.totalorder %s78, %s80
      %p84 = scmp.eq.s32.totalorder %s23, 0
      %p85 = por %p83, %p84
      %p86 = scmp.ne.s32.totalorder %s78, %s80
      %p87 = scmp.eq.s32.totalorder %s28, 1
      %p88 = por %p86, %p87
      %p89 = scmp.ne.s32.totalorder %s80, %s81
      %p90 = scmp.eq.s32.totalorder %s28, 0
      %p91 = por %p89, %p90
      %p92 = scmp.ne.s32.totalorder %s80, %s81
      %p93 = scmp.eq.s32.totalorder %s29, 1
      %p94 = por %p92, %p93
      %p96 = scmp.ne.s32.totalorder %s81, %s95
      %p97 = scmp.eq.s32.totalorder %s29, 0
      %p98 = por %p96, %p97
      %s100 = sadd.s32 %s99, 1
      %p103 = scmp.eq.s32.totalorder %s23, 1
      %p104 = scmp.ne.s32.totalorder %s99, %s101
      %p105 = scmp.eq.s32.totalorder %s23, 0
      %p106 = por %p104, %p105
      %p107 = scmp.ne.s32.totalorder %s99, %s101
      %p108 = scmp.eq.s32.totalorder %s28, 1
      %p109 = por %p107, %p108
      %p110 = scmp.ne.s32.totalorder %s101, %s102
      %p111 = scmp.eq.s32.totalorder %s28, 0
      %p112 = por %p110, %p111
      %p113 = scmp.ne.s32.totalorder %s101, %s102
      %p114 = scmp.eq.s32.totalorder %s29, 1
      %p115 = por %p113, %p114
      %p117 = scmp.ne.s32.totalorder %s102, %s116
      %p118 = scmp.eq.s32.totalorder %s29, 0
      %p119 = por %p117, %p118
      %s121 = sadd.s32 %s120, 1
      %p124 = scmp.eq.s32.totalorder %s23, 1
      %p125 = scmp.ne.s32.totalorder %s120, %s122
      %p126 = scmp.eq.s32.totalorder %s23, 0
      %p127 = por %p125, %p126
      %p128 = scmp.ne.s32.totalorder %s120, %s122
      %p129 = scmp.eq.s32.totalorder %s28, 1
      %p130 = por %p128, %p129
      %p131 = scmp.ne.s32.totalorder %s122, %s123
      %p132 = scmp.eq.s32.totalorder %s28, 0
      %p133 = por %p131, %p132
      %p134 = scmp.ne.s32.totalorder %s122, %s123
      %p135 = scmp.eq.s32.totalorder %s29, 1
      %p136 = por %p134, %p135
      %p138 = scmp.ne.s32.totalorder %s123, %s137
      %p139 = scmp.eq.s32.totalorder %s29, 0
      %p140 = por %p138, %p139
      %s141 = ssub.s32 %s23, %s30
      %p142 = scmp.eq.s32.totalorder %s141, 0
      %s144 = sadd.s32 %s143, 1
      %s145 = scalar_select %p142, %s143, %s144
      %p148 = pneg %p142
      %p149 = scmp.eq.s32.totalorder %s23, 1
      %p150 = por %p148, %p149
      %p151 = scmp.ne.s32.totalorder %s143, %s146
      %p152 = scmp.eq.s32.totalorder %s23, 0
      %p153 = por %p151, %p152
      %p154 = scmp.ne.s32.totalorder %s143, %s146
      %p155 = scmp.eq.s32.totalorder %s28, 1
      %p156 = por %p154, %p155
      %p157 = scmp.ne.s32.totalorder %s146, %s147
      %p158 = scmp.eq.s32.totalorder %s28, 0
      %p159 = por %p157, %p158
      %p160 = scmp.ne.s32.totalorder %s146, %s147
      %p161 = scmp.eq.s32.totalorder %s29, 1
      %p162 = por %p160, %p161
      %p164 = scmp.ne.s32.totalorder %s147, %s163
      %p165 = scmp.eq.s32.totalorder %s29, 0
      %p166 = por %p164, %p165
      %s167 = ssub.s32 %s23, %s30
      %p168 = scmp.eq.s32.totalorder %s167, 0
      %s170 = sadd.s32 %s169, 1
      %s171 = scalar_select %p168, %s169, %s170
      %p174 = pneg %p168
      %p175 = scmp.eq.s32.totalorder %s23, 1
      %p176 = por %p174, %p175
      %p177 = scmp.ne.s32.totalorder %s169, %s172
      %p178 = scmp.eq.s32.totalorder %s23, 0
      %p179 = por %p177, %p178
      %p180 = scmp.ne.s32.totalorder %s169, %s172
      %p181 = scmp.eq.s32.totalorder %s28, 1
      %p182 = por %p180, %p181
      %p183 = scmp.ne.s32.totalorder %s172, %s173
      %p184 = scmp.eq.s32.totalorder %s28, 0
      %p185 = por %p183, %p184
      %p186 = scmp.ne.s32.totalorder %s172, %s173
      %p187 = scmp.eq.s32.totalorder %s29, 1
      %p188 = por %p186, %p187
      %p190 = scmp.ne.s32.totalorder %s173, %s189
      %p191 = scmp.eq.s32.totalorder %s29, 0
      %p192 = por %p190, %p191
      %p193 = scmp.le.s32.totalorder 1, %s23
      %p194 = scmp.lt.s32.totalorder %s23, 3
      %p195 = pnand %p193, %p194
      %p196 = pneg %p195
      // Predicated region
      $region9: #{tpu_custom_call.1} parent=5 // pred_check
        _
      $region10: #{tpu_custom_call.1} parent=5 // pred_check_branch
        %198 = sbr.rel (%p195) target = $region12
      $region11: #{tpu_custom_call.1} parent=5 // pred_region
        %s199 = ssub.s32 %s23, 1
        // Predicated region
        $region13: #{tpu_custom_call.1} parent=11 // pred_check
          %p200 = pneg %p70
        $region14: #{tpu_custom_call.1} parent=11 // pred_check_branch
          %202 = sbr.rel (%p200) target = $region16
        $region15: #{tpu_custom_call.1} parent=11 // pred_region
          %s204 = ssub.s32 256, 256
          %205 = vsyncadd [#allocation8], %s204
          %s206 = sshll.u32 [#allocation7], 4
          %s207 = int_to_ptr.vmem [resolvable:$true] %s206
          %212 = dma.hbm_to_vmem [thread:$0]  %s1, 256, %s207, [#allocation8], 64, 64, 4
        $region16: #{tpu_custom_call.1} parent=11 // pred_fallthru
          _
        // Predicated region
        $region17: #{tpu_custom_call.1} parent=11 // pred_check
          %p213 = pneg %p91
        $region18: #{tpu_custom_call.1} parent=11 // pred_check_branch
          %215 = sbr.rel (%p213) target = $region20
        $region19: #{tpu_custom_call.1} parent=11 // pred_region
          _
        $region20: #{tpu_custom_call.1} parent=11 // pred_fallthru
          _
        // Predicated region
        $region21: #{tpu_custom_call.1} parent=11 // pred_check
          %p216 = pneg %p112
        $region22: #{tpu_custom_call.1} parent=11 // pred_check_branch
          %218 = sbr.rel (%p216) target = $region24
        $region23: #{tpu_custom_call.1} parent=11 // pred_region
          %s220 = ssub.s32 256, 256
          %221 = vsyncadd [#allocation8], %s220
          %s222 = sshll.u32 [#allocation9], 4
          %s223 = int_to_ptr.vmem [resolvable:$true] %s222
          %228 = dma.hbm_to_vmem [thread:$0]  %s3, 256, %s223, [#allocation8], 64, 64, 4
        $region24: #{tpu_custom_call.1} parent=11 // pred_fallthru
          _
        // Predicated region
        $region25: #{tpu_custom_call.1} parent=11 // pred_check
          %p229 = pneg %p133
        $region26: #{tpu_custom_call.1} parent=11 // pred_check_branch
          %231 = sbr.rel (%p229) target = $region28
        $region27: #{tpu_custom_call.1} parent=11 // pred_region
          _
        $region28: #{tpu_custom_call.1} parent=11 // pred_fallthru
          _
      $region12: #{tpu_custom_call.1} parent=5 // pred_fallthru
        _
      %p232 = scmp.lt.s32.totalorder %s23, 2
      // Predicated region
      $region29: #{tpu_custom_call.1} parent=5 // pred_check
        %p233 = pneg %p232
      $region30: #{tpu_custom_call.1} parent=5 // pred_check_branch
        %235 = sbr.rel (%p233) target = $region32
      $region31: #{tpu_custom_call.1} parent=5 // pred_region
        // Predicated region
        $region33: #{tpu_custom_call.1} parent=31 // pred_check
          %p236 = pneg %p43
        $region34: #{tpu_custom_call.1} parent=31 // pred_check_branch
          %238 = sbr.rel (%p236) target = $region36
        $region35: #{tpu_custom_call.1} parent=31 // pred_region
          %s239 = sand.u32 %s33, 1
          %s240 = scalar_lea.sflag [#allocation5], %s239
          %s241 = sand.u32 %s33, 1
          %s242 = smul.addr %s241, 8
          %s243 = scalar_lea.vmem [#allocation4], %s242
          %s245 = ssub.s32 128, 128
          %246 = vsyncadd %s240, %s245
          %s247 = smul.addr %s23, 128
          %s248 = scalar_lea.hbm %s0, %s247
          %s250 = sshll.u32 %s243, 4
          %s251 = int_to_ptr.vmem [resolvable:$true] %s250
          %253 = dma.hbm_to_vmem [thread:$0]  %s248, 128, %s251, %s240
        $region36: #{tpu_custom_call.1} parent=31 // pred_fallthru
          _
      $region32: #{tpu_custom_call.1} parent=5 // pred_fallthru
        _
      %p254 = scmp.le.s32.totalorder 1, %s23
      %p255 = scmp.lt.s32.totalorder %s23, 3
      %p256 = pnand %p254, %p255
      %p257 = pneg %p256
      // Predicated region
      $region37: #{tpu_custom_call.1} parent=5 // pred_check
        _
      $region38: #{tpu_custom_call.1} parent=5 // pred_check_branch
        %259 = sbr.rel (%p256) target = $region40
      $region39: #{tpu_custom_call.1} parent=5 // pred_region
        %s260 = ssub.s32 %s23, 1
        %s261 = sand.u32 %s36, 1
        %s262 = scalar_lea.sflag [#allocation5], %s261
        %s263 = sand.u32 %s36, 1
        %s264 = smul.addr %s263, 8
        %s265 = scalar_lea.vmem [#allocation4], %s264
        // Predicated region
        $region41: #{tpu_custom_call.1} parent=39 // pred_check
          %p266 = pneg %p49
        $region42: #{tpu_custom_call.1} parent=39 // pred_check_branch
          %268 = sbr.rel (%p266) target = $region44
        $region43: #{tpu_custom_call.1} parent=39 // pred_region
          %269 = dma.done %s262, 128
        $region44: #{tpu_custom_call.1} parent=39 // pred_fallthru
          _
        // Predicated region
        $region45: #{tpu_custom_call.1} parent=39 // pred_check
          %p270 = pneg %p70
        $region46: #{tpu_custom_call.1} parent=39 // pred_check_branch
          %272 = sbr.rel (%p270) target = $region48
        $region47: #{tpu_custom_call.1} parent=39 // pred_region
          %273 = dma.done [#allocation8], 256
        $region48: #{tpu_custom_call.1} parent=39 // pred_fallthru
          _
        // Predicated region
        $region49: #{tpu_custom_call.1} parent=39 // pred_check
          %p274 = pneg %p112
        $region50: #{tpu_custom_call.1} parent=39 // pred_check_branch
          %276 = sbr.rel (%p274) target = $region52
        $region51: #{tpu_custom_call.1} parent=39 // pred_region
          %277 = dma.done [#allocation8], 256
        $region52: #{tpu_custom_call.1} parent=39 // pred_fallthru
          _
        %s278 = sand.u32 %s36, 1
        %s279 = scalar_lea.sflag [#allocation5], %s278
        %s280 = sand.u32 %s36, 1
        %s281 = smul.addr %s280, 8
        %s282 = scalar_lea.vmem [#allocation4], %s281
        %p283 = pneg %p49
        %p284 = pneg %p46
        %p285 = pneg %p70
        %p286 = pneg %p67
        %p287 = pneg %p91
        %p288 = pneg %p88
        %p289 = pneg %p112
        %p290 = pneg %p109
        %p291 = pneg %p133
        %p292 = pneg %p130
        %p293 = pneg %p159
        %p294 = pneg %p156
        %s295 = sand.u32 %s146, 1
        %s296 = scalar_lea.sflag [#allocation6], %s295
        %s297 = sand.u32 %s146, 1
        %s298 = smul.addr %s297, 8
        %s299 = scalar_lea.vmem [#allocation10], %s298
        %p300 = pneg %p185
        %p301 = pneg %p182
        %s302 = sand.u32 %s172, 1
        %s303 = scalar_lea.sflag [#allocation12], %s302
        %s304 = sand.u32 %s172, 1
        %s305 = smul.addr %s304, 8
        %s306 = scalar_lea.vmem [#allocation11], %s305
        %v308 = vld [vmem:[#allocation7] sm:$0xf]
        %v309 = vld [vmem:[#allocation7 + $0x4] sm:$0xf]
        %v310 = vld [vmem:[#allocation7 + $0x8] sm:$0xf]
        %v311 = vld [vmem:[#allocation7 + $0xc] sm:$0xf]
        %v312 = vld [vmem:[#allocation9] sm:$0xf]
        %v313 = vld [vmem:[#allocation9 + $0x4] sm:$0xf]
        %v314 = vld [vmem:[#allocation9 + $0x8] sm:$0xf]
        %v315 = vld [vmem:[#allocation9 + $0xc] sm:$0xf]
        %v316 = vld [vmem:[%s2] sm:$0x1]
        %v317 = vld [vmem:[%s4] sm:$0x1]
        %v318 = vld [vmem:[%s265] sm:$0xff]
        %v319 = vpack.c.bf16 %v318, %v318
        %v321 = vlaneseq
        %v322 = vshrl.u32 %v321, 7
        %v323 = vsub.s32 0, %v322
        %v324 = vrot.slane %v316, %v323
        %v330 = vunpack.c.l.b16 %v308
        %v331 = vunpack.c.l.b16 %v309
        %v332 = vunpack.c.l.b16 %v310
        %v333 = vunpack.c.l.b16 %v311
        %v334 = vpack.c.b16 %v331, %v330
        %v335 = vpack.c.b16 %v333, %v332
        %vm338 = vcmask 261120
        %v340 = vsel %vm338, %v319, 0
        %342 = vmatprep.subr.bf16.mxu0 0
        %343 = vmatpush1.bf16.msra.mxu0 %v334
        %344 = vmatprep.subr.bf16.mxu0 0
        %345 = vmatpush1.bf16.msra.mxu0 %v335
        %346 = vmatprep.subr.bf16.mxu0 0
        %347 = vmatpush1.bf16.msra.mxu0 0
        %348 = vmatprep.subr.bf16.mxu0 0
        %349 = vmatpush1.bf16.msra.mxu0 0
        %350 = vmatprep.subr.bf16.mxu0 0
        %351 = vmatpush1.bf16.msra.mxu0 0
        %352 = vmatprep.subr.bf16.mxu0 0
        %353 = vmatpush1.bf16.msra.mxu0 0
        %354 = vmatprep.subr.bf16.mxu0 0
        %355 = vmatpush1.bf16.msra.mxu0 0
        %356 = vmatprep.subr.bf16.mxu0 0
        %357 = vmatpush1.bf16.msra.mxu0 0
        %358 = vmatprep.subr.bf16.mxu0 0
        %359 = vmatpush1.bf16.msra.mxu0 0
        %360 = vmatprep.subr.bf16.mxu0 0
        %361 = vmatpush1.bf16.msra.mxu0 0
        %362 = vmatprep.subr.bf16.mxu0 0
        %363 = vmatpush1.bf16.msra.mxu0 0
        %364 = vmatprep.subr.bf16.mxu0 0
        %365 = vmatpush1.bf16.msra.mxu0 0
        %366 = vmatprep.subr.bf16.mxu0 0
        %367 = vmatpush1.bf16.msra.mxu0 0
        %368 = vmatprep.subr.bf16.mxu0 0
        %369 = vmatpush1.bf16.msra.mxu0 0
        %370 = vmatprep.subr.bf16.mxu0 0
        %371 = vmatpush1.bf16.msra.mxu0 0
        %372 = vmatprep.subr.bf16.mxu0 0
        %373 = vmatpush1.bf16.msra.mxu0 0
        %374 = vmatprep.mubr.bf16.mxu0 0
        %375 = vmatmul.mubr.bf16.gmra.mrb[0].mxu0 %v340
        %v376 = vpop.f32.mrb[0].mxu0
        %v377 = vadd.f32 %v324, %v376
        %v378 = vpop.f32.mrb[0].mxu0
        %v379 = vpop.f32.mrb[0].mxu0
        %v380 = vpop.f32.mrb[0].mxu0
        %381 = vdwg.mxu0
        %vm382 = vcmask 64512
        %383 = vst.msk [vmem:[#allocation3] sm:$0xff] %vm382, 0.0
        %v384 = vpack.c.bf16 %v377, %v377
        %386 = vrot.lane.b32.xlu0 %v384, 96
        %v387 = vpop.permute.xlu0 %386
        %v389 = vsel %vm382, %v384, 0
        %v392 = vsel %vm382, %v387, 0
        %394 = vmatprep.subr.bf16.mxu0 0
        %395 = vmatpush1.bf16.xpose.msra.mxu0 %v392
        %396 = vmatprep.subr.bf16.mxu0 0
        %397 = vmatpush1.bf16.xpose.msra.mxu0 0
        %398 = vmatprep.subr.bf16.mxu0 0
        %399 = vmatpush1.bf16.xpose.msra.mxu0 0
        %400 = vmatprep.subr.bf16.mxu0 0
        %401 = vmatpush1.bf16.xpose.msra.mxu0 0
        %402 = vmatprep.subr.bf16.mxu0 0
        %403 = vmatpush1.bf16.xpose.msra.mxu0 0
        %404 = vmatprep.subr.bf16.mxu0 0
        %405 = vmatpush1.bf16.xpose.msra.mxu0 0
        %406 = vmatprep.subr.bf16.mxu0 0
        %407 = vmatpush1.bf16.xpose.msra.mxu0 0
        %408 = vmatprep.subr.bf16.mxu0 0
        %409 = vmatpush1.bf16.xpose.msra.mxu0 0
        %410 = vmatprep.subr.bf16.mxu0 0
        %411 = vmatpush1.bf16.xpose.msra.mxu0 0
        %412 = vmatprep.subr.bf16.mxu0 0
        %413 = vmatpush1.bf16.xpose.msra.mxu0 0
        %414 = vmatprep.subr.bf16.mxu0 0
        %415 = vmatpush1.bf16.xpose.msra.mxu0 0
        %416 = vmatprep.subr.bf16.mxu0 0
        %417 = vmatpush1.bf16.xpose.msra.mxu0 0
        %418 = vmatprep.subr.bf16.mxu0 0
        %419 = vmatpush1.bf16.xpose.msra.mxu0 0
        %420 = vmatprep.subr.bf16.mxu0 0
        %421 = vmatpush1.bf16.xpose.msra.mxu0 0
        %422 = vmatprep.subr.bf16.mxu0 0
        %423 = vmatpush1.bf16.xpose.msra.mxu0 0
        %424 = vmatprep.subr.bf16.mxu0 0
        %425 = vmatpush1.bf16.xpose.msra.mxu0 0
        %426 = vmatprep.mubr.bf16.mxu0 0
        %427 = vmatmul.mubr.bf16.gmra.mrb[0].mxu0 %v389
        %v428 = vpop.f32.mrb[0].mxu0
        %v429 = vadd.f32 0.0, %v428
        %v430 = vpop.f32.mrb[0].mxu0
        %v431 = vpop.f32.mrb[0].mxu0
        %v432 = vpop.f32.mrb[0].mxu0
        %433 = vdwg.mxu0
        %v434 = vsel %vm382, %v429, -inf
        %435 = vmax.xlane.f32.xlu0 %v434
        %v436 = vpop.xlane.xlu0 %435
        %v437 = vsub.f32 %v429, %v436
        %v438 = vmul.f32 %v437, 1.442695
        %v439 = vpow.pop %v438
        %v440 = vsel %vm382, %v439, 0.0
        %441 = vadd.xlane.f32.xlu0 %v440
        %v442 = vpop.xlane.xlu0 %441
        %v443 = vrcp.pop %v442
        %v444 = vmul.f32 %v439, %v443
        %v445 = vld [vmem:[#allocation3] sm:$0xff]
        %v446 = vadd.f32 %v445, %v444
        %447 = vst.msk [vmem:[#allocation3] sm:$0xff] %vm382, %v446
        %v448 = vpack.c.bf16 %v444, %v444
        %449 = vrot.lane.b32.xlu0 %v384, 64
        %v450 = vpop.permute.xlu0 %449
        %v452 = vsel %vm382, %v448, 0
        %vm454 = vcmask 1043456
        %v456 = vsel %vm454, %v450, 0
        %458 = vmatprep.subr.bf16.mxu0 0
        %459 = vmatpush1.bf16.msra.mxu0 %v456
        %460 = vmatprep.subr.bf16.mxu0 0
        %461 = vmatpush1.bf16.msra.mxu0 0
        %462 = vmatprep.subr.bf16.mxu0 0
        %463 = vmatpush1.bf16.msra.mxu0 0
        %464 = vmatprep.subr.bf16.mxu0 0
        %465 = vmatpush1.bf16.msra.mxu0 0
        %466 = vmatprep.subr.bf16.mxu0 0
        %467 = vmatpush1.bf16.msra.mxu0 0
        %468 = vmatprep.subr.bf16.mxu0 0
        %469 = vmatpush1.bf16.msra.mxu0 0
        %470 = vmatprep.subr.bf16.mxu0 0
        %471 = vmatpush1.bf16.msra.mxu0 0
        %472 = vmatprep.subr.bf16.mxu0 0
        %473 = vmatpush1.bf16.msra.mxu0 0
        %474 = vmatprep.subr.bf16.mxu0 0
        %475 = vmatpush1.bf16.msra.mxu0 0
        %476 = vmatprep.subr.bf16.mxu0 0
        %477 = vmatpush1.bf16.msra.mxu0 0
        %478 = vmatprep.subr.bf16.mxu0 0
        %479 = vmatpush1.bf16.msra.mxu0 0
        %480 = vmatprep.subr.bf16.mxu0 0
        %481 = vmatpush1.bf16.msra.mxu0 0
        %482 = vmatprep.subr.bf16.mxu0 0
        %483 = vmatpush1.bf16.msra.mxu0 0
        %484 = vmatprep.subr.bf16.mxu0 0
        %485 = vmatpush1.bf16.msra.mxu0 0
        %486 = vmatprep.subr.bf16.mxu0 0
        %487 = vmatpush1.bf16.msra.mxu0 0
        %488 = vmatprep.subr.bf16.mxu0 0
        %489 = vmatpush1.bf16.msra.mxu0 0
        %490 = vmatprep.mubr.bf16.mxu0 0
        %491 = vmatmul.mubr.bf16.gmra.mrb[0].mxu0 %v452
        %v492 = vpop.f32.mrb[0].mxu0
        %v493 = vadd.f32 0.0, %v492
        %v494 = vpop.f32.mrb[0].mxu0
        %v495 = vpop.f32.mrb[0].mxu0
        %v496 = vpop.f32.mrb[0].mxu0
        %497 = vdwg.mxu0
        %498 = vst.msk [vmem:[#allocation2] sm:$0xff] %vm382, %v493
        %499 = vrot.lane.b32.xlu0 %v384, 120
        %v500 = vpop.permute.xlu0 %499
        %501 = vrot.lane.b32.xlu0 %v384, 88
        %v502 = vpop.permute.xlu0 %501
        %v504 = vsel %vm382, %v500, 0
        %v507 = vsel %vm382, %v502, 0
        %509 = vmatprep.subr.bf16.mxu0 0
        %510 = vmatpush1.bf16.xpose.msra.mxu0 %v507
        %511 = vmatprep.subr.bf16.mxu0 0
        %512 = vmatpush1.bf16.xpose.msra.mxu0 0
        %513 = vmatprep.subr.bf16.mxu0 0
        %514 = vmatpush1.bf16.xpose.msra.mxu0 0
        %515 = vmatprep.subr.bf16.mxu0 0
        %516 = vmatpush1.bf16.xpose.msra.mxu0 0
        %517 = vmatprep.subr.bf16.mxu0 0
        %518 = vmatpush1.bf16.xpose.msra.mxu0 0
        %519 = vmatprep.subr.bf16.mxu0 0
        %520 = vmatpush1.bf16.xpose.msra.mxu0 0
        %521 = vmatprep.subr.bf16.mxu0 0
        %522 = vmatpush1.bf16.xpose.msra.mxu0 0
        %523 = vmatprep.subr.bf16.mxu0 0
        %524 = vmatpush1.bf16.xpose.msra.mxu0 0
        %525 = vmatprep.subr.bf16.mxu0 0
        %526 = vmatpush1.bf16.xpose.msra.mxu0 0
        %527 = vmatprep.subr.bf16.mxu0 0
        %528 = vmatpush1.bf16.xpose.msra.mxu0 0
        %529 = vmatprep.subr.bf16.mxu0 0
        %530 = vmatpush1.bf16.xpose.msra.mxu0 0
        %531 = vmatprep.subr.bf16.mxu0 0
        %532 = vmatpush1.bf16.xpose.msra.mxu0 0
        %533 = vmatprep.subr.bf16.mxu0 0
        %534 = vmatpush1.bf16.xpose.msra.mxu0 0
        %535 = vmatprep.subr.bf16.mxu0 0
        %536 = vmatpush1.bf16.xpose.msra.mxu0 0
        %537 = vmatprep.subr.bf16.mxu0 0
        %538 = vmatpush1.bf16.xpose.msra.mxu0 0
        %539 = vmatprep.subr.bf16.mxu0 0
        %540 = vmatpush1.bf16.xpose.msra.mxu0 0
        %541 = vmatprep.mubr.bf16.mxu0 0
        %542 = vmatmul.mubr.bf16.gmra.mrb[0].mxu0 %v504
        %v543 = vpop.f32.mrb[0].mxu0
        %v544 = vadd.f32 0.0, %v543
        %v545 = vpop.f32.mrb[0].mxu0
        %v546 = vpop.f32.mrb[0].mxu0
        %v547 = vpop.f32.mrb[0].mxu0
        %548 = vdwg.mxu0
        %v549 = vsel %vm382, %v544, -inf
        %550 = vmax.xlane.f32.xlu0 %v549
        %v551 = vpop.xlane.xlu0 %550
        %v552 = vsub.f32 %v544, %v551
        %v553 = vmul.f32 %v552, 1.442695
        %v554 = vpow.pop %v553
        %v555 = vsel %vm382, %v554, 0.0
        %556 = vadd.xlane.f32.xlu0 %v555
        %v557 = vpop.xlane.xlu0 %556
        %v558 = vrcp.pop %v557
        %v559 = vmul.f32 %v554, %v558
        %v560 = vld [vmem:[#allocation3] sm:$0xff]
        %v561 = vadd.f32 %v560, %v559
        %562 = vst.msk [vmem:[#allocation3] sm:$0xff] %vm382, %v561
        %v563 = vpack.c.bf16 %v559, %v559
        %564 = vrot.lane.b32.xlu0 %v384, 56
        %v565 = vpop.permute.xlu0 %564
        %v567 = vsel %vm382, %v563, 0
        %v570 = vsel %vm454, %v565, 0
        %572 = vmatprep.subr.bf16.mxu0 0
        %573 = vmatpush1.bf16.msra.mxu0 %v570
        %574 = vmatprep.subr.bf16.mxu0 0
        %575 = vmatpush1.bf16.msra.mxu0 0
        %576 = vmatprep.subr.bf16.mxu0 0
        %577 = vmatpush1.bf16.msra.mxu0 0
        %578 = vmatprep.subr.bf16.mxu0 0
        %579 = vmatpush1.bf16.msra.mxu0 0
        %580 = vmatprep.subr.bf16.mxu0 0
        %581 = vmatpush1.bf16.msra.mxu0 0
        %582 = vmatprep.subr.bf16.mxu0 0
        %583 = vmatpush1.bf16.msra.mxu0 0
        %584 = vmatprep.subr.bf16.mxu0 0
        %585 = vmatpush1.bf16.msra.mxu0 0
        %586 = vmatprep.subr.bf16.mxu0 0
        %587 = vmatpush1.bf16.msra.mxu0 0
        %588 = vmatprep.subr.bf16.mxu0 0
        %589 = vmatpush1.bf16.msra.mxu0 0
        %590 = vmatprep.subr.bf16.mxu0 0
        %591 = vmatpush1.bf16.msra.mxu0 0
        %592 = vmatprep.subr.bf16.mxu0 0
        %593 = vmatpush1.bf16.msra.mxu0 0
        %594 = vmatprep.subr.bf16.mxu0 0
        %595 = vmatpush1.bf16.msra.mxu0 0
        %596 = vmatprep.subr.bf16.mxu0 0
        %597 = vmatpush1.bf16.msra.mxu0 0
        %598 = vmatprep.subr.bf16.mxu0 0
        %599 = vmatpush1.bf16.msra.mxu0 0
        %600 = vmatprep.subr.bf16.mxu0 0
        %601 = vmatpush1.bf16.msra.mxu0 0
        %602 = vmatprep.subr.bf16.mxu0 0
        %603 = vmatpush1.bf16.msra.mxu0 0
        %604 = vmatprep.mubr.bf16.mxu0 0
        %605 = vmatmul.mubr.bf16.gmra.mrb[0].mxu0 %v567
        %v606 = vpop.f32.mrb[0].mxu0
        %v607 = vadd.f32 0.0, %v606
        %v608 = vpop.f32.mrb[0].mxu0
        %v609 = vpop.f32.mrb[0].mxu0
        %v610 = vpop.f32.mrb[0].mxu0
        %611 = vdwg.mxu0
        %613 = vrot.lane.b32.xlu0 %v607, 8
        %v614 = vpop.permute.xlu0 %613
        %vm616 = vcmask 130112
        %617 = vst.msk [vmem:[#allocation2] sm:$0xff] %vm616, %v614
        %618 = vrot.lane.b32.xlu0 %v384, 112
        %v619 = vpop.permute.xlu0 %618
        %620 = vrot.lane.b32.xlu0 %v384, 80
        %v621 = vpop.permute.xlu0 %620
        %v623 = vsel %vm382, %v619, 0
        %v626 = vsel %vm382, %v621, 0
        %628 = vmatprep.subr.bf16.mxu0 0
        %629 = vmatpush1.bf16.xpose.msra.mxu0 %v626
        %630 = vmatprep.subr.bf16.mxu0 0
        %631 = vmatpush1.bf16.xpose.msra.mxu0 0
        %632 = vmatprep.subr.bf16.mxu0 0
        %633 = vmatpush1.bf16.xpose.msra.mxu0 0
        %634 = vmatprep.subr.bf16.mxu0 0
        %635 = vmatpush1.bf16.xpose.msra.mxu0 0
        %636 = vmatprep.subr.bf16.mxu0 0
        %637 = vmatpush1.bf16.xpose.msra.mxu0 0
        %638 = vmatprep.subr.bf16.mxu0 0
        %639 = vmatpush1.bf16.xpose.msra.mxu0 0
        %640 = vmatprep.subr.bf16.mxu0 0
        %641 = vmatpush1.bf16.xpose.msra.mxu0 0
        %642 = vmatprep.subr.bf16.mxu0 0
        %643 = vmatpush1.bf16.xpose.msra.mxu0 0
        %644 = vmatprep.subr.bf16.mxu0 0
        %645 = vmatpush1.bf16.xpose.msra.mxu0 0
        %646 = vmatprep.subr.bf16.mxu0 0
        %647 = vmatpush1.bf16.xpose.msra.mxu0 0
        %648 = vmatprep.subr.bf16.mxu0 0
        %649 = vmatpush1.bf16.xpose.msra.mxu0 0
        %650 = vmatprep.subr.bf16.mxu0 0
        %651 = vmatpush1.bf16.xpose.msra.mxu0 0
        %652 = vmatprep.subr.bf16.mxu0 0
        %653 = vmatpush1.bf16.xpose.msra.mxu0 0
        %654 = vmatprep.subr.bf16.mxu0 0
        %655 = vmatpush1.bf16.xpose.msra.mxu0 0
        %656 = vmatprep.subr.bf16.mxu0 0
        %657 = vmatpush1.bf16.xpose.msra.mxu0 0
        %658 = vmatprep.subr.bf16.mxu0 0
        %659 = vmatpush1.bf16.xpose.msra.mxu0 0
        %660 = vmatprep.mubr.bf16.mxu0 0
        %661 = vmatmul.mubr.bf16.gmra.mrb[0].mxu0 %v623
        %v662 = vpop.f32.mrb[0].mxu0
        %v663 = vadd.f32 0.0, %v662
        %v664 = vpop.f32.mrb[0].mxu0
        %v665 = vpop.f32.mrb[0].mxu0
        %v666 = vpop.f32.mrb[0].mxu0
        %667 = vdwg.mxu0
        %v668 = vsel %vm382, %v663, -inf
        %669 = vmax.xlane.f32.xlu0 %v668
        %v670 = vpop.xlane.xlu0 %669
        %v671 = vsub.f32 %v663, %v670
        %v672 = vmul.f32 %v671, 1.442695
        %v673 = vpow.pop %v672
        %v674 = vsel %vm382, %v673, 0.0
        %675 = vadd.xlane.f32.xlu0 %v674
        %v676 = vpop.xlane.xlu0 %675
        %v677 = vrcp.pop %v676
        %v678 = vmul.f32 %v673, %v677
        %v679 = vld [vmem:[#allocation3] sm:$0xff]
        %v680 = vadd.f32 %v679, %v678
        %681 = vst.msk [vmem:[#allocation3] sm:$0xff] %vm382, %v680
        %v682 = vpack.c.bf16 %v678, %v678
        %683 = vrot.lane.b32.xlu0 %v384, 48
        %v684 = vpop.permute.xlu0 %683
        %v686 = vsel %vm382, %v682, 0
        %v689 = vsel %vm454, %v684, 0
        %691 = vmatprep.subr.bf16.mxu0 0
        %692 = vmatpush1.bf16.msra.mxu0 %v689
        %693 = vmatprep.subr.bf16.mxu0 0
        %694 = vmatpush1.bf16.msra.mxu0 0
        %695 = vmatprep.subr.bf16.mxu0 0
        %696 = vmatpush1.bf16.msra.mxu0 0
        %697 = vmatprep.subr.bf16.mxu0 0
        %698 = vmatpush1.bf16.msra.mxu0 0
        %699 = vmatprep.subr.bf16.mxu0 0
        %700 = vmatpush1.bf16.msra.mxu0 0
        %701 = vmatprep.subr.bf16.mxu0 0
        %702 = vmatpush1.bf16.msra.mxu0 0
        %703 = vmatprep.subr.bf16.mxu0 0
        %704 = vmatpush1.bf16.msra.mxu0 0
        %705 = vmatprep.subr.bf16.mxu0 0
        %706 = vmatpush1.bf16.msra.mxu0 0
        %707 = vmatprep.subr.bf16.mxu0 0
        %708 = vmatpush1.bf16.msra.mxu0 0
        %709 = vmatprep.subr.bf16.mxu0 0
        %710 = vmatpush1.bf16.msra.mxu0 0
        %711 = vmatprep.subr.bf16.mxu0 0
        %712 = vmatpush1.bf16.msra.mxu0 0
        %713 = vmatprep.subr.bf16.mxu0 0
        %714 = vmatpush1.bf16.msra.mxu0 0
        %715 = vmatprep.subr.bf16.mxu0 0
        %716 = vmatpush1.bf16.msra.mxu0 0
        %717 = vmatprep.subr.bf16.mxu0 0
        %718 = vmatpush1.bf16.msra.mxu0 0
        %719 = vmatprep.subr.bf16.mxu0 0
        %720 = vmatpush1.bf16.msra.mxu0 0
        %721 = vmatprep.subr.bf16.mxu0 0
        %722 = vmatpush1.bf16.msra.mxu0 0
        %723 = vmatprep.mubr.bf16.mxu0 0
        %724 = vmatmul.mubr.bf16.gmra.mrb[0].mxu0 %v686
        %v725 = vpop.f32.mrb[0].mxu0
        %v726 = vadd.f32 0.0, %v725
        %v727 = vpop.f32.mrb[0].mxu0
        %v728 = vpop.f32.mrb[0].mxu0
        %v729 = vpop.f32.mrb[0].mxu0
        %730 = vdwg.mxu0
        %732 = vrot.lane.b32.xlu0 %v726, 16
        %v733 = vpop.permute.xlu0 %732
        %vm735 = vcmask 195712
        %736 = vst.msk [vmem:[#allocation2] sm:$0xff] %vm735, %v733
        %737 = vrot.lane.b32.xlu0 %v384, 104
        %v738 = vpop.permute.xlu0 %737
        %739 = vrot.lane.b32.xlu0 %v384, 72
        %v740 = vpop.permute.xlu0 %739
        %v742 = vsel %vm382, %v738, 0
        %v745 = vsel %vm382, %v740, 0
        %747 = vmatprep.subr.bf16.mxu0 0
        %748 = vmatpush1.bf16.xpose.msra.mxu0 %v745
        %749 = vmatprep.subr.bf16.mxu0 0
        %750 = vmatpush1.bf16.xpose.msra.mxu0 0
        %751 = vmatprep.subr.bf16.mxu0 0
        %752 = vmatpush1.bf16.xpose.msra.mxu0 0
        %753 = vmatprep.subr.bf16.mxu0 0
        %754 = vmatpush1.bf16.xpose.msra.mxu0 0
        %755 = vmatprep.subr.bf16.mxu0 0
        %756 = vmatpush1.bf16.xpose.msra.mxu0 0
        %757 = vmatprep.subr.bf16.mxu0 0
        %758 = vmatpush1.bf16.xpose.msra.mxu0 0
        %759 = vmatprep.subr.bf16.mxu0 0
        %760 = vmatpush1.bf16.xpose.msra.mxu0 0
        %761 = vmatprep.subr.bf16.mxu0 0
        %762 = vmatpush1.bf16.xpose.msra.mxu0 0
        %763 = vmatprep.subr.bf16.mxu0 0
        %764 = vmatpush1.bf16.xpose.msra.mxu0 0
        %765 = vmatprep.subr.bf16.mxu0 0
        %766 = vmatpush1.bf16.xpose.msra.mxu0 0
        %767 = vmatprep.subr.bf16.mxu0 0
        %768 = vmatpush1.bf16.xpose.msra.mxu0 0
        %769 = vmatprep.subr.bf16.mxu0 0
        %770 = vmatpush1.bf16.xpose.msra.mxu0 0
        %771 = vmatprep.subr.bf16.mxu0 0
        %772 = vmatpush1.bf16.xpose.msra.mxu0 0
        %773 = vmatprep.subr.bf16.mxu0 0
        %774 = vmatpush1.bf16.xpose.msra.mxu0 0
        %775 = vmatprep.subr.bf16.mxu0 0
        %776 = vmatpush1.bf16.xpose.msra.mxu0 0
        %777 = vmatprep.subr.bf16.mxu0 0
        %778 = vmatpush1.bf16.xpose.msra.mxu0 0
        %779 = vmatprep.mubr.bf16.mxu0 0
        %780 = vmatmul.mubr.bf16.gmra.mrb[0].mxu0 %v742
        %v781 = vpop.f32.mrb[0].mxu0
        %v782 = vadd.f32 0.0, %v781
        %v783 = vpop.f32.mrb[0].mxu0
        %v784 = vpop.f32.mrb[0].mxu0
        %v785 = vpop.f32.mrb[0].mxu0
        %786 = vdwg.mxu0
        %v787 = vsel %vm382, %v782, -inf
        %788 = vmax.xlane.f32.xlu0 %v787
        %v789 = vpop.xlane.xlu0 %788
        %v790 = vsub.f32 %v782, %v789
        %v791 = vmul.f32 %v790, 1.442695
        %v792 = vpow.pop %v791
        %v793 = vsel %vm382, %v792, 0.0
        %794 = vadd.xlane.f32.xlu0 %v793
        %v795 = vpop.xlane.xlu0 %794
        %v796 = vrcp.pop %v795
        %v797 = vmul.f32 %v792, %v796
        %v798 = vld [vmem:[#allocation3] sm:$0xff]
        %v799 = vadd.f32 %v798, %v797
        %800 = vst.msk [vmem:[#allocation3] sm:$0xff] %vm382, %v799
        %v801 = vpack.c.bf16 %v797, %v797
        %802 = vrot.lane.b32.xlu0 %v384, 40
        %v803 = vpop.permute.xlu0 %802
        %v805 = vsel %vm382, %v801, 0
        %v808 = vsel %vm454, %v803, 0
        %810 = vmatprep.subr.bf16.mxu0 0
        %811 = vmatpush1.bf16.msra.mxu0 %v808
        %812 = vmatprep.subr.bf16.mxu0 0
        %813 = vmatpush1.bf16.msra.mxu0 0
        %814 = vmatprep.subr.bf16.mxu0 0
        %815 = vmatpush1.bf16.msra.mxu0 0
        %816 = vmatprep.subr.bf16.mxu0 0
        %817 = vmatpush1.bf16.msra.mxu0 0
        %818 = vmatprep.subr.bf16.mxu0 0
        %819 = vmatpush1.bf16.msra.mxu0 0
        %820 = vmatprep.subr.bf16.mxu0 0
        %821 = vmatpush1.bf16.msra.mxu0 0
        %822 = vmatprep.subr.bf16.mxu0 0
        %823 = vmatpush1.bf16.msra.mxu0 0
        %824 = vmatprep.subr.bf16.mxu0 0
        %825 = vmatpush1.bf16.msra.mxu0 0
        %826 = vmatprep.subr.bf16.mxu0 0
        %827 = vmatpush1.bf16.msra.mxu0 0
        %828 = vmatprep.subr.bf16.mxu0 0
        %829 = vmatpush1.bf16.msra.mxu0 0
        %830 = vmatprep.subr.bf16.mxu0 0
        %831 = vmatpush1.bf16.msra.mxu0 0
        %832 = vmatprep.subr.bf16.mxu0 0
        %833 = vmatpush1.bf16.msra.mxu0 0
        %834 = vmatprep.subr.bf16.mxu0 0
        %835 = vmatpush1.bf16.msra.mxu0 0
        %836 = vmatprep.subr.bf16.mxu0 0
        %837 = vmatpush1.bf16.msra.mxu0 0
        %838 = vmatprep.subr.bf16.mxu0 0
        %839 = vmatpush1.bf16.msra.mxu0 0
        %840 = vmatprep.subr.bf16.mxu0 0
        %841 = vmatpush1.bf16.msra.mxu0 0
        %842 = vmatprep.mubr.bf16.mxu0 0
        %843 = vmatmul.mubr.bf16.gmra.mrb[0].mxu0 %v805
        %v844 = vpop.f32.mrb[0].mxu0
        %v845 = vadd.f32 0.0, %v844
        %v846 = vpop.f32.mrb[0].mxu0
        %v847 = vpop.f32.mrb[0].mxu0
        %v848 = vpop.f32.mrb[0].mxu0
        %849 = vdwg.mxu0
        %851 = vrot.lane.b32.xlu0 %v845, 24
        %v852 = vpop.permute.xlu0 %851
        %vm854 = vcmask 261312
        %855 = vst.msk [vmem:[#allocation2] sm:$0xff] %vm854, %v852
        %v856 = vld [vmem:[#allocation2] sm:$0xff]
        %v857 = vpack.c.bf16 %v856, %v856
        %v859 = vlaneseq
        %v860 = vshrl.u32 %v859, 7
        %v861 = vsub.s32 0, %v860
        %v862 = vrot.slane %v317, %v861
        %v868 = vunpack.c.l.b16 %v312
        %v869 = vunpack.c.l.b16 %v313
        %v870 = vunpack.c.l.b16 %v314
        %v871 = vunpack.c.l.b16 %v315
        %v872 = vpack.c.b16 %v869, %v868
        %v873 = vpack.c.b16 %v871, %v870
        %v877 = vsel %vm338, %v857, 0
        %879 = vmatprep.subr.bf16.mxu0 0
        %880 = vmatpush1.bf16.msra.mxu0 %v872
        %881 = vmatprep.subr.bf16.mxu0 0
        %882 = vmatpush1.bf16.msra.mxu0 %v873
        %883 = vmatprep.subr.bf16.mxu0 0
        %884 = vmatpush1.bf16.msra.mxu0 0
        %885 = vmatprep.subr.bf16.mxu0 0
        %886 = vmatpush1.bf16.msra.mxu0 0
        %887 = vmatprep.subr.bf16.mxu0 0
        %888 = vmatpush1.bf16.msra.mxu0 0
        %889 = vmatprep.subr.bf16.mxu0 0
        %890 = vmatpush1.bf16.msra.mxu0 0
        %891 = vmatprep.subr.bf16.mxu0 0
        %892 = vmatpush1.bf16.msra.mxu0 0
        %893 = vmatprep.subr.bf16.mxu0 0
        %894 = vmatpush1.bf16.msra.mxu0 0
        %895 = vmatprep.subr.bf16.mxu0 0
        %896 = vmatpush1.bf16.msra.mxu0 0
        %897 = vmatprep.subr.bf16.mxu0 0
        %898 = vmatpush1.bf16.msra.mxu0 0
        %899 = vmatprep.subr.bf16.mxu0 0
        %900 = vmatpush1.bf16.msra.mxu0 0
        %901 = vmatprep.subr.bf16.mxu0 0
        %902 = vmatpush1.bf16.msra.mxu0 0
        %903 = vmatprep.subr.bf16.mxu0 0
        %904 = vmatpush1.bf16.msra.mxu0 0
        %905 = vmatprep.subr.bf16.mxu0 0
        %906 = vmatpush1.bf16.msra.mxu0 0
        %907 = vmatprep.subr.bf16.mxu0 0
        %908 = vmatpush1.bf16.msra.mxu0 0
        %909 = vmatprep.subr.bf16.mxu0 0
        %910 = vmatpush1.bf16.msra.mxu0 0
        %911 = vmatprep.mubr.bf16.mxu0 0
        %912 = vmatmul.mubr.bf16.gmra.mrb[0].mxu0 %v877
        %v913 = vpop.f32.mrb[0].mxu0
        %v914 = vadd.f32 %v862, %v913
        %v915 = vpop.f32.mrb[0].mxu0
        %v916 = vpop.f32.mrb[0].mxu0
        %v917 = vpop.f32.mrb[0].mxu0
        %918 = vdwg.mxu0
        %919 = vst.msk [vmem:[%s299] sm:$0xff] %vm338, %v914
        %v920 = vld [vmem:[#allocation3] sm:$0xff]
        %v921 = vmul.f32 %v920, 0.25
        %922 = vst.msk [vmem:[%s306] sm:$0xff] %vm382, %v921
        %s923 = sand.u32 %s146, 1
        %s924 = scalar_lea.sflag [#allocation6], %s923
        %s925 = sand.u32 %s146, 1
        %s926 = smul.addr %s925, 8
        %s927 = scalar_lea.vmem [#allocation10], %s926
        %s928 = sand.u32 %s172, 1
        %s929 = scalar_lea.sflag [#allocation12], %s928
        %s930 = sand.u32 %s172, 1
        %s931 = smul.addr %s930, 8
        %s932 = scalar_lea.vmem [#allocation11], %s931
        // Predicated region
        $region53: #{tpu_custom_call.1} parent=39 // pred_check
          %p933 = pneg %p156
        $region54: #{tpu_custom_call.1} parent=39 // pred_check_branch
          %935 = sbr.rel (%p933) target = $region56
        $region55: #{tpu_custom_call.1} parent=39 // pred_region
          %s937 = ssub.s32 128, 128
          %938 = vsyncadd %s924, %s937
          %s939 = smul.addr %s28, 128
          %s940 = scalar_lea.hbm %s5, %s939
          %s942 = sshll.u32 %s927, 4
          %s943 = int_to_ptr.vmem [resolvable:$true] %s942
          %945 = dma.vmem_to_hbm [thread:$0]  %s943, 128, %s940, %s924
        $region56: #{tpu_custom_call.1} parent=39 // pred_fallthru
          _
        // Predicated region
        $region57: #{tpu_custom_call.1} parent=39 // pred_check
          %p946 = pneg %p182
        $region58: #{tpu_custom_call.1} parent=39 // pred_check_branch
          %948 = sbr.rel (%p946) target = $region60
        $region59: #{tpu_custom_call.1} parent=39 // pred_region
          %s950 = ssub.s32 128, 128
          %951 = vsyncadd %s929, %s950
          %s952 = smul.addr %s28, 128
          %s953 = scalar_lea.hbm %s6, %s952
          %s955 = sshll.u32 %s932, 4
          %s956 = int_to_ptr.vmem [resolvable:$true] %s955
          %958 = dma.vmem_to_hbm [thread:$0]  %s956, 128, %s953, %s929
        $region60: #{tpu_custom_call.1} parent=39 // pred_fallthru
          _
      $region40: #{tpu_custom_call.1} parent=5 // pred_fallthru
        _
      %p959 = scmp.le.s32.totalorder 2, %s23
      // Predicated region
      $region61: #{tpu_custom_call.1} parent=5 // pred_check
        %p960 = pneg %p959
      $region62: #{tpu_custom_call.1} parent=5 // pred_check_branch
        %962 = sbr.rel (%p960) target = $region64
      $region63: #{tpu_custom_call.1} parent=5 // pred_region
        %s963 = ssub.s32 %s23, 2
        // Predicated region
        $region65: #{tpu_custom_call.1} parent=63 // pred_check
          %p964 = pneg %p162
        $region66: #{tpu_custom_call.1} parent=63 // pred_check_branch
          %966 = sbr.rel (%p964) target = $region68
        $region67: #{tpu_custom_call.1} parent=63 // pred_region
          %s967 = sand.u32 %s147, 1
          %s968 = scalar_lea.sflag [#allocation6], %s967
          %s969 = sand.u32 %s147, 1
          %s970 = smul.addr %s969, 8
          %s971 = scalar_lea.vmem [#allocation10], %s970
          %972 = dma.done %s968, 128
        $region68: #{tpu_custom_call.1} parent=63 // pred_fallthru
          _
        // Predicated region
        $region69: #{tpu_custom_call.1} parent=63 // pred_check
          %p973 = pneg %p188
        $region70: #{tpu_custom_call.1} parent=63 // pred_check_branch
          %975 = sbr.rel (%p973) target = $region72
        $region71: #{tpu_custom_call.1} parent=63 // pred_region
          %s976 = sand.u32 %s173, 1
          %s977 = scalar_lea.sflag [#allocation12], %s976
          %s978 = sand.u32 %s173, 1
          %s979 = smul.addr %s978, 8
          %s980 = scalar_lea.vmem [#allocation11], %s979
          %981 = dma.done %s977, 128
        $region72: #{tpu_custom_call.1} parent=63 // pred_fallthru
          _
      $region64: #{tpu_custom_call.1} parent=5 // pred_fallthru
        _
    $region6: #{tpu_custom_call.1} parent=1 // loop_footer
      %s27 = sadd.s32 1, %s23
    $region7: #{tpu_custom_call.1} parent=1 // loop_footer_branch
      %22 = sbr.rel target = $region3
    $region8: #{tpu_custom_call.1} parent=1 // loop_exit
      _
    %982 = vsyncpa [#allocation5], 1
    %s983 = scalar_lea.sflag [#allocation5], 1
    %984 = vsyncpa %s983, 1
    %985 = vsyncpa [#allocation8], 1
    %986 = vsyncpa [#allocation6], 1
    %s987 = scalar_lea.sflag [#allocation6], 1
    %988 = vsyncpa %s987, 1
    %989 = vsyncpa [#allocation12], 1
    %s990 = scalar_lea.sflag [#allocation12], 1
    %991 = vsyncpa %s990, 1

</llo_original>
